<compile_context>
chip_gen: v6e
topology: v6e:2x2x1
jax: 0.10.0
libtpu: 0.0.40
codegen_flags: <defaults>
</compile_context>

<pallas_src>
import jax
import jax.numpy as jnp
from jax.experimental import pallas as pl
from jax.experimental.pallas import tpu as pltpu


IN_DIM = 1024
HID_DIM = 512   # ndf1
OUT_DIM = 128   # output_shape
DEFAULT_BLOCK_BATCH = 1024   # rows per grid step for large N
SINGLE_TILE_MAX = 256        # below this, run the whole batch as one tile
VMEM_LIMIT_BYTES = 48 * 1024 * 1024  # explicit: > v5e's 16 MiB default, < v7x's 64 MiB


def _mlp_kernel(x_ref, w1_ref, b1_ref, w2_ref, b2_ref, o_ref):
    # x_ref:  (TB, 1024)  native dtype (f32 or bf16), streamed / double-buffered
    # w1_ref: (1024, 512) bf16, resident (single-buffered)
    # b1_ref: (1, 512)    f32,  resident
    # w2_ref: (512, 128)  bf16, resident (single-buffered)
    # b2_ref: (1, 128)    f32,  resident
    # o_ref:  (TB, 128)   f32
    x = x_ref[...].astype(jnp.bfloat16)            # in-kernel cast: no extra HBM pass
    h = jnp.dot(x, w1_ref[...], preferred_element_type=jnp.float32)
    h = jnp.maximum(h + b1_ref[...], 0.0)          # bias + ReLU in f32 on the VPU
    h = h.astype(jnp.bfloat16)                     # halve MXU passes of 2nd matmul
    y = jnp.dot(h, w2_ref[...], preferred_element_type=jnp.float32) + b2_ref[...]
    o_ref[...] = y.astype(o_ref.dtype)


def _round_up(n, m):
    return -(-n // m) * m


def _pick_tile(n, block_batch):
    """Pick the per-grid-step batch tile.

    - tiny N: one tile covering the whole batch (block dim == full array dim,
      so no 8/16-alignment requirement and no padding).
    - medium N: split into >= 2 grid steps so both v7x TensorCores are used.
    - large N: fixed `block_batch` tile; partial last block handled by Pallas.
    """
    if n <= min(block_batch, SINGLE_TILE_MAX):
        return n
    if n < 2 * block_batch:
        return min(block_batch, _round_up(pl.cdiv(n, 2), 16))
    return block_batch


def prototype_net_forward(x, w1, b1, w2, b2, *, block_batch=DEFAULT_BLOCK_BATCH):
    """x: [N, 1024] (f32 or bf16). w1: [1024, 512], b1: [512], w2: [512, 128], b2: [128].

    Returns [N, 128] f32. Matmuls run in bf16 on the MXU with f32 accumulation.
    """
    N = x.shape[0]
    assert x.shape[1] == IN_DIM
    tb = _pick_tile(N, block_batch)
    grid = (pl.cdiv(N, tb),)

    # bf16 weights (small, one-time), f32 biases.
    w1_bf16 = w1.astype(jnp.bfloat16)
    w2_bf16 = w2.astype(jnp.bfloat16)
    b1_2d = b1.reshape(1, HID_DIM).astype(jnp.float32)
    b2_2d = b2.reshape(1, OUT_DIM).astype(jnp.float32)

    cost = pl.CostEstimate(
        flops=2 * N * (IN_DIM * HID_DIM + HID_DIM * OUT_DIM),
        transcendentals=0,
        bytes_accessed=(
            N * IN_DIM * x.dtype.itemsize                    # x (native dtype)
            + (IN_DIM * HID_DIM + HID_DIM * OUT_DIM) * 2     # weights (bf16)
            + (HID_DIM + OUT_DIM) * 4                        # biases (f32)
            + N * OUT_DIM * 4                                # output (f32)
        ),
    )

    out = pl.pallas_call(
        _mlp_kernel,
        out_shape=jax.ShapeDtypeStruct((N, OUT_DIM), jnp.float32),
        grid_spec=pltpu.PrefetchScalarGridSpec(
            num_scalar_prefetch=0,
            grid=grid,
            in_specs=[
                # Streamed activation tile (double-buffered by default).
                pl.BlockSpec((tb, IN_DIM), lambda i: (i, 0)),
                # Resident weights/biases: constant index_map -> single buffer.
                pl.BlockSpec((IN_DIM, HID_DIM), lambda i: (0, 0),
                             pipeline_mode=pl.Buffered(1)),
                pl.BlockSpec((1, HID_DIM), lambda i: (0, 0),
                             pipeline_mode=pl.Buffered(1)),
                pl.BlockSpec((HID_DIM, OUT_DIM), lambda i: (0, 0),
                             pipeline_mode=pl.Buffered(1)),
                pl.BlockSpec((1, OUT_DIM), lambda i: (0, 0),
                             pipeline_mode=pl.Buffered(1)),
            ],
            out_specs=pl.BlockSpec((tb, OUT_DIM), lambda i: (i, 0)),
        ),
        compiler_params=pltpu.CompilerParams(
            dimension_semantics=("parallel",),        # megacore-shardable batch axis
            vmem_limit_bytes=VMEM_LIMIT_BYTES,        # needed on v5e for tb >= 1024
        ),
        cost_estimate=cost,
    )(x, w1_bf16, b1_2d, w2_bf16, b2_2d)

    return out


def init_params(key):
    """Deterministic init mimicking torch.nn.Linear defaults (U(-1/sqrt(fan_in), +))."""
    k1, k2, k3, k4 = jax.random.split(key, 4)
    bound1 = 1.0 / (IN_DIM ** 0.5)
    bound2 = 1.0 / (HID_DIM ** 0.5)
    # Stored as [in, out] (transposed relative to torch's [out, in]).
    w1 = jax.random.uniform(k1, (IN_DIM, HID_DIM), jnp.float32, -bound1, bound1)
    b1 = jax.random.uniform(k2, (HID_DIM,), jnp.float32, -bound1, bound1)
    w2 = jax.random.uniform(k3, (HID_DIM, OUT_DIM), jnp.float32, -bound2, bound2)
    b2 = jax.random.uniform(k4, (OUT_DIM,), jnp.float32, -bound2, bound2)
    return w1, b1, w2, b2


def _reference(x, w1, b1, w2, b2):
    return jnp.maximum(x @ w1 + b1, 0.0) @ w2 + b2


if __name__ == "__main__":
    key = jax.random.PRNGKey(0)
    kx1, kx2, kx3, kp = jax.random.split(key, 4)
    w1, b1, w2, b2 = init_params(kp)

    # bf16 matmuls with f32 accumulation -> looser tolerance vs f32 reference.
    TOL = dict(atol=5e-2, rtol=5e-2)

    # Case 1: tiny serving batch -> single full-batch tile (tb == N, grid=(1,)).
    N1 = 8
    x1 = jax.random.normal(kx1, (N1, IN_DIM), jnp.float32)
    out1 = jax.block_until_ready(prototype_net_forward(x1, w1, b1, w2, b2))
    ref1 = _reference(x1, w1, b1, w2, b2)
    assert out1.shape == (N1, OUT_DIM)
    assert jnp.allclose(out1, ref1, **TOL), float(jnp.max(jnp.abs(out1 - ref1)))

    # Case 2: non-tile-aligned batch, no padding: grid=(2,), last block partial
    # (masked output stores; garbage OOB input rows never reach the output).
    N2 = 20
    x2 = jax.random.normal(kx2, (N2, IN_DIM), jnp.float32)
    out2 = jax.block_until_ready(
        prototype_net_forward(x2, w1, b1, w2, b2, block_batch=16))
    ref2 = _reference(x2, w1, b1, w2, b2)
    assert out2.shape == (N2, OUT_DIM)
    assert jnp.allclose(out2, ref2, **TOL), float(jnp.max(jnp.abs(out2 - ref2)))

    # Case 3: medium batch -> split into two grid steps (v7x megacore path),
    # second step is a partial block.
    N3 = 300
    x3 = jax.random.normal(kx3, (N3, IN_DIM), jnp.float32)
    out3 = jax.block_until_ready(prototype_net_forward(x3, w1, b1, w2, b2))
    ref3 = _reference(x3, w1, b1, w2, b2)
    assert out3.shape == (N3, OUT_DIM)
    assert jnp.allclose(out3, ref3, **TOL), float(jnp.max(jnp.abs(out3 - ref3)))

    print("KERNEL_OK")
</pallas_src>

<mosaic_0001>
module attributes {stable_mosaic.version = 11 : i64} {
  func.func @_mlp_kernel(%arg0: i32, %arg1: memref<8x1024xf32, #tpu.memory_space<vmem>>, %arg2: memref<1024x512xbf16, #tpu.memory_space<vmem>>, %arg3: memref<1x512xf32, #tpu.memory_space<vmem>>, %arg4: memref<512x128xbf16, #tpu.memory_space<vmem>>, %arg5: memref<1x128xf32, #tpu.memory_space<vmem>>, %arg6: memref<8x128xf32, #tpu.memory_space<vmem>>) attributes {dimension_semantics = [#tpu.dimension_semantics<parallel>], iteration_bounds = array<i64: 1>, scalar_prefetch = 0 : i64, scratch_operands = 0 : i64, tpu.core_type = #tpu.core_type<tc>, window_params = [{transform_indices = @transform_0, window_bounds = array<i64: 8, 1024>}, {pipeline_mode = #tpu.pipeline_mode<synchronous>, transform_indices = @transform_1, window_bounds = array<i64: 1024, 512>}, {pipeline_mode = #tpu.pipeline_mode<synchronous>, transform_indices = @transform_2, window_bounds = array<i64: 1, 512>}, {pipeline_mode = #tpu.pipeline_mode<synchronous>, transform_indices = @transform_3, window_bounds = array<i64: 512, 128>}, {pipeline_mode = #tpu.pipeline_mode<synchronous>, transform_indices = @transform_4, window_bounds = array<i64: 1, 128>}, {transform_indices = @transform_5, window_bounds = array<i64: 8, 128>}]} {
    %c0 = arith.constant 0 : index
    %c0_0 = arith.constant 0 : index
    %0 = vector.load %arg1[%c0, %c0_0] : memref<8x1024xf32, #tpu.memory_space<vmem>>, vector<8x1024xf32>
    %1 = arith.truncf %0 : vector<8x1024xf32> to vector<8x1024xbf16>
    %c0_1 = arith.constant 0 : index
    %c0_2 = arith.constant 0 : index
    %2 = vector.load %arg2[%c0_1, %c0_2] : memref<1024x512xbf16, #tpu.memory_space<vmem>>, vector<1024x512xbf16>
    %cst = arith.constant dense<0.000000e+00> : vector<8x512xf32>
    %3 = tpu.matmul %1, %2, %cst {dimension_numbers = #tpu.dot_dimension_numbers<[1], [0], [0], [1], [0, 0, 1, 1], [], []>} : vector<8x1024xbf16>, vector<1024x512xbf16>, vector<8x512xf32> -> vector<8x512xf32>
    %c0_3 = arith.constant 0 : index
    %c0_4 = arith.constant 0 : index
    %4 = vector.load %arg3[%c0_3, %c0_4] : memref<1x512xf32, #tpu.memory_space<vmem>>, vector<1x512xf32>
    %5 = vector.broadcast %4 : vector<1x512xf32> to vector<8x512xf32>
    %6 = arith.addf %3, %5 : vector<8x512xf32>
    %cst_5 = arith.constant 0.000000e+00 : f32
    %7 = vector.broadcast %cst_5 : f32 to vector<8x512xf32>
    %8 = arith.maximumf %6, %7 : vector<8x512xf32>
    %9 = arith.truncf %8 : vector<8x512xf32> to vector<8x512xbf16>
    %c0_6 = arith.constant 0 : index
    %c0_7 = arith.constant 0 : index
    %10 = vector.load %arg4[%c0_6, %c0_7] : memref<512x128xbf16, #tpu.memory_space<vmem>>, vector<512x128xbf16>
    %cst_8 = arith.constant dense<0.000000e+00> : vector<8x128xf32>
    %11 = tpu.matmul %9, %10, %cst_8 {dimension_numbers = #tpu.dot_dimension_numbers<[1], [0], [0], [1], [0, 0, 1, 1], [], []>} : vector<8x512xbf16>, vector<512x128xbf16>, vector<8x128xf32> -> vector<8x128xf32>
    %c0_9 = arith.constant 0 : index
    %c0_10 = arith.constant 0 : index
    %12 = vector.load %arg5[%c0_9, %c0_10] : memref<1x128xf32, #tpu.memory_space<vmem>>, vector<1x128xf32>
    %13 = vector.broadcast %12 : vector<1x128xf32> to vector<8x128xf32>
    %14 = arith.addf %11, %13 : vector<8x128xf32>
    %c0_11 = arith.constant 0 : index
    %c0_12 = arith.constant 0 : index
    %15 = vector.load %arg6[%c0_11, %c0_12] : memref<8x128xf32, #tpu.memory_space<vmem>>, vector<8x128xf32>
    tpu.vector_store %arg6[%c0_11, %c0_12], %14 {strides = array<i32>} : memref<8x128xf32, #tpu.memory_space<vmem>>, vector<8x128xf32>,
    return
  }
  func.func @transform_0(%arg0: i32) -> (i32, i32) {
    %c0_i32 = arith.constant 0 : i32
    %c0_i32_0 = arith.constant 0 : i32
    return %arg0, %c0_i32 : i32, i32
  }
  func.func @transform_1(%arg0: i32) -> (i32, i32) {
    %c0_i32 = arith.constant 0 : i32
    %c0_i32_0 = arith.constant 0 : i32
    %c0_i32_1 = arith.constant 0 : i32
    return %c0_i32, %c0_i32_0 : i32, i32
  }
  func.func @transform_2(%arg0: i32) -> (i32, i32) {
    %c0_i32 = arith.constant 0 : i32
    %c0_i32_0 = arith.constant 0 : i32
    %c0_i32_1 = arith.constant 0 : i32
    return %c0_i32, %c0_i32_0 : i32, i32
  }
  func.func @transform_3(%arg0: i32) -> (i32, i32) {
    %c0_i32 = arith.constant 0 : i32
    %c0_i32_0 = arith.constant 0 : i32
    %c0_i32_1 = arith.constant 0 : i32
    return %c0_i32, %c0_i32_0 : i32, i32
  }
  func.func @transform_4(%arg0: i32) -> (i32, i32) {
    %c0_i32 = arith.constant 0 : i32
    %c0_i32_0 = arith.constant 0 : i32
    %c0_i32_1 = arith.constant 0 : i32
    return %c0_i32, %c0_i32_0 : i32, i32
  }
  func.func @transform_5(%arg0: i32) -> (i32, i32) {
    %c0_i32 = arith.constant 0 : i32
    %c0_i32_0 = arith.constant 0 : i32
    return %arg0, %c0_i32 : i32, i32
  }
}

</mosaic_0001>

<llo_original>
// kernel: tpu_custom_call.1
$region0: #{tpu_custom_call.1}
  #allocation0 [shape = 'u32[]', space=smem, size = 0x4, offset = 0x4, fixed_abs, tag = 'smem constant byte address 0x4 - core index']
  #allocation1 [shape = 'u32[144,128]{1,0:T(1,128)}', space=vmem, size = 0x12000, scoped, tag = 'internal scratch']
  %s0 = inlined_call_operand.hbm [shape: f32[8,1024], index: 0, kind: input, shape index: {}]
  %s1 = inlined_call_operand.hbm [shape: bf16[1024,512], index: 1, kind: input, shape index: {}]
  %s2 = inlined_call_operand.hbm [shape: f32[1,512], index: 2, kind: input, shape index: {}]
  %s3 = inlined_call_operand.hbm [shape: bf16[512,128], index: 3, kind: input, shape index: {}]
  %s4 = inlined_call_operand.vmem [shape: f32[1,128], index: 4, kind: input, shape index: {}]
  %s5 = inlined_call_operand.hbm [shape: f32[8,128], index: 5, kind: output, shape index: {}]
  %s6 = sld [smem:[#allocation0]]
  $region46: #{tpu_custom_call.1} parent=0
    _
  %s8 = ssub.s32 1, %s6
  %s9 = scalar_select 0, %s8, %s6
  $region1: #{tpu_custom_call.1} parent=0
    #allocation2 [shape = 'u8[32768]{0}', space=vmem, size = 0x8000, scoped, tag = 'input window, operand 0, single buffered']
    #allocation3 [shape = 's32[1]{0}', space=sflag, size = 0x4, scoped, tag = 'scoped memory for tpu_custom_call.1']
    #allocation4 [shape = 's32[1]{0}', space=sflag, size = 0x4, scoped, tag = 'scoped memory for tpu_custom_call.1']
    #allocation5 [shape = 'u8[1048576]{0}', space=vmem, size = 0x100000, scoped, tag = 'input window, operand 1, single buffered']
    #allocation6 [shape = 's32[1]{0}', space=sflag, size = 0x4, scoped, tag = 'scoped memory for tpu_custom_call.1']
    #allocation7 [shape = 'u8[2048]{0}', space=vmem, size = 0x800, scoped, tag = 'input window, operand 2, single buffered']
    #allocation8 [shape = 'u8[131072]{0}', space=vmem, size = 0x20000, scoped, tag = 'input window, operand 3, single buffered']
    #allocation9 [shape = 's32[1]{0}', space=sflag, size = 0x4, scoped, tag = 'scoped memory for tpu_custom_call.1']
    #allocation10 [shape = 'u8[4096]{0}', space=vmem, size = 0x1000, scoped, tag = 'output window, operand 0, single buffered']
    %10 = vsyncpa [#allocation3], 0
    %11 = vsyncpa [#allocation6], 0
    %12 = vsyncpa [#allocation9], 0
    %13 = vsyncpa [#allocation4], 0
    // Predicated region
    $region2: #{tpu_custom_call.1} parent=1 // pred_check
      _
    $region3: #{tpu_custom_call.1} parent=1 // pred_check_branch
      %15 = sbr.rel (0) target = $region5
    $region4: #{tpu_custom_call.1} parent=1 // pred_region
      %s17 = ssub.s32 1024, 1024
      %18 = vsyncadd [#allocation3], %s17
      %s20 = sshll.u32 [#allocation2], 4
      %s21 = int_to_ptr.vmem [resolvable:$true] %s20
      %23 = dma.hbm_to_vmem [thread:$0]  %s0, 1024, %s21, [#allocation3]
    $region5: #{tpu_custom_call.1} parent=1 // pred_fallthru
      _
    // Predicated region
    $region6: #{tpu_custom_call.1} parent=1 // pred_check
      _
    $region7: #{tpu_custom_call.1} parent=1 // pred_check_branch
      %25 = sbr.rel (0) target = $region9
    $region8: #{tpu_custom_call.1} parent=1 // pred_region
      %s27 = ssub.s32 32768, 32768
      %28 = vsyncadd [#allocation6], %s27
      %s29 = sshll.u32 [#allocation5], 4
      %s30 = int_to_ptr.vmem [resolvable:$true] %s29
      %35 = dma.hbm_to_vmem [thread:$0]  %s1, 32768, %s30, [#allocation6], 256, 256, 16
    $region9: #{tpu_custom_call.1} parent=1 // pred_fallthru
      _
    // Predicated region
    $region10: #{tpu_custom_call.1} parent=1 // pred_check
      _
    $region11: #{tpu_custom_call.1} parent=1 // pred_check_branch
      %37 = sbr.rel (0) target = $region13
    $region12: #{tpu_custom_call.1} parent=1 // pred_region
      %s39 = ssub.s32 64, 64
      %40 = vsyncadd [#allocation6], %s39
      %s42 = sshll.u32 [#allocation7], 4
      %s43 = int_to_ptr.vmem [resolvable:$true] %s42
      %45 = dma.hbm_to_vmem [thread:$0]  %s2, 64, %s43, [#allocation6]
    $region13: #{tpu_custom_call.1} parent=1 // pred_fallthru
      _
    // Predicated region
    $region14: #{tpu_custom_call.1} parent=1 // pred_check
      _
    $region15: #{tpu_custom_call.1} parent=1 // pred_check_branch
      %47 = sbr.rel (0) target = $region17
    $region16: #{tpu_custom_call.1} parent=1 // pred_region
      %s49 = ssub.s32 4096, 4096
      %50 = vsyncadd [#allocation9], %s49
      %s51 = sshll.u32 [#allocation8], 4
      %s52 = int_to_ptr.vmem [resolvable:$true] %s51
      %57 = dma.hbm_to_vmem [thread:$0]  %s3, 4096, %s52, [#allocation9], 64, 64, 4
    $region17: #{tpu_custom_call.1} parent=1 // pred_fallthru
      _
    // Predicated region
    $region18: #{tpu_custom_call.1} parent=1 // pred_check
      _
    $region19: #{tpu_custom_call.1} parent=1 // pred_check_branch
      %59 = sbr.rel (0) target = $region21
    $region20: #{tpu_custom_call.1} parent=1 // pred_region
      _
    $region21: #{tpu_custom_call.1} parent=1 // pred_fallthru
      _
    // Predicated region
    $region22: #{tpu_custom_call.1} parent=1 // pred_check
      _
    $region23: #{tpu_custom_call.1} parent=1 // pred_check_branch
      %61 = sbr.rel (0) target = $region25
    $region24: #{tpu_custom_call.1} parent=1 // pred_region
      %62 = dma.done [#allocation3], 1024
    $region25: #{tpu_custom_call.1} parent=1 // pred_fallthru
      _
    // Predicated region
    $region26: #{tpu_custom_call.1} parent=1 // pred_check
      _
    $region27: #{tpu_custom_call.1} parent=1 // pred_check_branch
      %64 = sbr.rel (0) target = $region29
    $region28: #{tpu_custom_call.1} parent=1 // pred_region
      %65 = dma.done [#allocation6], 32768
    $region29: #{tpu_custom_call.1} parent=1 // pred_fallthru
      _
    // Predicated region
    $region30: #{tpu_custom_call.1} parent=1 // pred_check
      _
    $region31: #{tpu_custom_call.1} parent=1 // pred_check_branch
      %67 = sbr.rel (0) target = $region33
    $region32: #{tpu_custom_call.1} parent=1 // pred_region
      %68 = dma.done [#allocation6], 64
    $region33: #{tpu_custom_call.1} parent=1 // pred_fallthru
      _
    // Predicated region
    $region34: #{tpu_custom_call.1} parent=1 // pred_check
      _
    $region35: #{tpu_custom_call.1} parent=1 // pred_check_branch
      %70 = sbr.rel (0) target = $region37
    $region36: #{tpu_custom_call.1} parent=1 // pred_region
      %71 = dma.done [#allocation9], 4096
    $region37: #{tpu_custom_call.1} parent=1 // pred_fallthru
      _
    %v73 = vld [vmem:[#allocation2] sm:$0xff]
    %v74 = vld [vmem:[#allocation2 + $0x8] sm:$0xff]
    %v75 = vld [vmem:[#allocation2 + $0x10] sm:$0xff]
    %v76 = vld [vmem:[#allocation2 + $0x18] sm:$0xff]
    %v77 = vld [vmem:[#allocation2 + $0x20] sm:$0xff]
    %v78 = vld [vmem:[#allocation2 + $0x28] sm:$0xff]
    %v79 = vld [vmem:[#allocation2 + $0x30] sm:$0xff]
    %v80 = vld [vmem:[#allocation2 + $0x38] sm:$0xff]
    %v81 = vpack.c.bf16 %v73, %v73
    %v82 = vpack.c.bf16 %v74, %v74
    %v83 = vpack.c.bf16 %v75, %v75
    %v84 = vpack.c.bf16 %v76, %v76
    %v85 = vpack.c.bf16 %v77, %v77
    %v86 = vpack.c.bf16 %v78, %v78
    %v87 = vpack.c.bf16 %v79, %v79
    %v88 = vpack.c.bf16 %v80, %v80
    %v89 = vld [vmem:[#allocation5] sm:$0xff]
    %v90 = vld [vmem:[#allocation5 + $0x8] sm:$0xff]
    %v91 = vld [vmem:[#allocation5 + $0x10] sm:$0xff]
    %v92 = vld [vmem:[#allocation5 + $0x18] sm:$0xff]
    %v93 = vld [vmem:[#allocation5 + $0x20] sm:$0xff]
    %v94 = vld [vmem:[#allocation5 + $0x28] sm:$0xff]
    %v95 = vld [vmem:[#allocation5 + $0x30] sm:$0xff]
    %v96 = vld [vmem:[#allocation5 + $0x38] sm:$0xff]
    %v97 = vld [vmem:[#allocation5 + $0x40] sm:$0xff]
    %v98 = vld [vmem:[#allocation5 + $0x48] sm:$0xff]
    %v99 = vld [vmem:[#allocation5 + $0x50] sm:$0xff]
    %v100 = vld [vmem:[#allocation5 + $0x58] sm:$0xff]
    %v101 = vld [vmem:[#allocation5 + $0x60] sm:$0xff]
    %v102 = vld [vmem:[#allocation5 + $0x68] sm:$0xff]
    %v103 = vld [vmem:[#allocation5 + $0x70] sm:$0xff]
    %v104 = vld [vmem:[#allocation5 + $0x78] sm:$0xff]
    %v105 = vld [vmem:[#allocation5 + $0x80] sm:$0xff]
    %v106 = vld [vmem:[#allocation5 + $0x88] sm:$0xff]
    %v107 = vld [vmem:[#allocation5 + $0x90] sm:$0xff]
    %v108 = vld [vmem:[#allocation5 + $0x98] sm:$0xff]
    %v109 = vld [vmem:[#allocation5 + $0xa0] sm:$0xff]
    %v110 = vld [vmem:[#allocation5 + $0xa8] sm:$0xff]
    %v111 = vld [vmem:[#allocation5 + $0xb0] sm:$0xff]
    %v112 = vld [vmem:[#allocation5 + $0xb8] sm:$0xff]
    %v113 = vld [vmem:[#allocation5 + $0xc0] sm:$0xff]
    %v114 = vld [vmem:[#allocation5 + $0xc8] sm:$0xff]
    %v115 = vld [vmem:[#allocation5 + $0xd0] sm:$0xff]
    %v116 = vld [vmem:[#allocation5 + $0xd8] sm:$0xff]
    %v117 = vld [vmem:[#allocation5 + $0xe0] sm:$0xff]
    %v118 = vld [vmem:[#allocation5 + $0xe8] sm:$0xff]
    %v119 = vld [vmem:[#allocation5 + $0xf0] sm:$0xff]
    %v120 = vld [vmem:[#allocation5 + $0xf8] sm:$0xff]
    %v121 = vld [vmem:[#allocation5 + $0x100] sm:$0xff]
    %v122 = vld [vmem:[#allocation5 + $0x108] sm:$0xff]
    %v123 = vld [vmem:[#allocation5 + $0x110] sm:$0xff]
    %v124 = vld [vmem:[#allocation5 + $0x118] sm:$0xff]
    %v125 = vld [vmem:[#allocation5 + $0x120] sm:$0xff]
    %v126 = vld [vmem:[#allocation5 + $0x128] sm:$0xff]
    %v127 = vld [vmem:[#allocation5 + $0x130] sm:$0xff]
    %v128 = vld [vmem:[#allocation5 + $0x138] sm:$0xff]
    %v129 = vld [vmem:[#allocation5 + $0x140] sm:$0xff]
    %v130 = vld [vmem:[#allocation5 + $0x148] sm:$0xff]
    %v131 = vld [vmem:[#allocation5 + $0x150] sm:$0xff]
    %v132 = vld [vmem:[#allocation5 + $0x158] sm:$0xff]
    %v133 = vld [vmem:[#allocation5 + $0x160] sm:$0xff]
    %v134 = vld [vmem:[#allocation5 + $0x168] sm:$0xff]
    %v135 = vld [vmem:[#allocation5 + $0x170] sm:$0xff]
    %v136 = vld [vmem:[#allocation5 + $0x178] sm:$0xff]
    %v137 = vld [vmem:[#allocation5 + $0x180] sm:$0xff]
    %v138 = vld [vmem:[#allocation5 + $0x188] sm:$0xff]
    %v139 = vld [vmem:[#allocation5 + $0x190] sm:$0xff]
    %v140 = vld [vmem:[#allocation5 + $0x198] sm:$0xff]
    %v141 = vld [vmem:[#allocation5 + $0x1a0] sm:$0xff]
    %v142 = vld [vmem:[#allocation5 + $0x1a8] sm:$0xff]
    %v143 = vld [vmem:[#allocation5 + $0x1b0] sm:$0xff]
    %v144 = vld [vmem:[#allocation5 + $0x1b8] sm:$0xff]
    %v145 = vld [vmem:[#allocation5 + $0x1c0] sm:$0xff]
    %v146 = vld [vmem:[#allocation5 + $0x1c8] sm:$0xff]
    %v147 = vld [vmem:[#allocation5 + $0x1d0] sm:$0xff]
    %v148 = vld [vmem:[#allocation5 + $0x1d8] sm:$0xff]
    %v149 = vld [vmem:[#allocation5 + $0x1e0] sm:$0xff]
    %v150 = vld [vmem:[#allocation5 + $0x1e8] sm:$0xff]
    %v151 = vld [vmem:[#allocation5 + $0x1f0] sm:$0xff]
    %v152 = vld [vmem:[#allocation5 + $0x1f8] sm:$0xff]
    %v153 = vld [vmem:[#allocation5 + $0x200] sm:$0xff]
    %v154 = vld [vmem:[#allocation5 + $0x208] sm:$0xff]
    %v155 = vld [vmem:[#allocation5 + $0x210] sm:$0xff]
    %v156 = vld [vmem:[#allocation5 + $0x218] sm:$0xff]
    %v157 = vld [vmem:[#allocation5 + $0x220] sm:$0xff]
    %v158 = vld [vmem:[#allocation5 + $0x228] sm:$0xff]
    %v159 = vld [vmem:[#allocation5 + $0x230] sm:$0xff]
    %v160 = vld [vmem:[#allocation5 + $0x238] sm:$0xff]
    %v161 = vld [vmem:[#allocation5 + $0x240] sm:$0xff]
    %v162 = vld [vmem:[#allocation5 + $0x248] sm:$0xff]
    %v163 = vld [vmem:[#allocation5 + $0x250] sm:$0xff]
    %v164 = vld [vmem:[#allocation5 + $0x258] sm:$0xff]
    %v165 = vld [vmem:[#allocation5 + $0x260] sm:$0xff]
    %v166 = vld [vmem:[#allocation5 + $0x268] sm:$0xff]
    %v167 = vld [vmem:[#allocation5 + $0x270] sm:$0xff]
    %v168 = vld [vmem:[#allocation5 + $0x278] sm:$0xff]
    %v169 = vld [vmem:[#allocation5 + $0x280] sm:$0xff]
    %v170 = vld [vmem:[#allocation5 + $0x288] sm:$0xff]
    %v171 = vld [vmem:[#allocation5 + $0x290] sm:$0xff]
    %v172 = vld [vmem:[#allocation5 + $0x298] sm:$0xff]
    %v173 = vld [vmem:[#allocation5 + $0x2a0] sm:$0xff]
    %v174 = vld [vmem:[#allocation5 + $0x2a8] sm:$0xff]
    %v175 = vld [vmem:[#allocation5 + $0x2b0] sm:$0xff]
    %v176 = vld [vmem:[#allocation5 + $0x2b8] sm:$0xff]
    %v177 = vld [vmem:[#allocation5 + $0x2c0] sm:$0xff]
    %v178 = vld [vmem:[#allocation5 + $0x2c8] sm:$0xff]
    %v179 = vld [vmem:[#allocation5 + $0x2d0] sm:$0xff]
    %v180 = vld [vmem:[#allocation5 + $0x2d8] sm:$0xff]
    %v181 = vld [vmem:[#allocation5 + $0x2e0] sm:$0xff]
    %v182 = vld [vmem:[#allocation5 + $0x2e8] sm:$0xff]
    %v183 = vld [vmem:[#allocation5 + $0x2f0] sm:$0xff]
    %v184 = vld [vmem:[#allocation5 + $0x2f8] sm:$0xff]
    %v185 = vld [vmem:[#allocation5 + $0x300] sm:$0xff]
    %v186 = vld [vmem:[#allocation5 + $0x308] sm:$0xff]
    %v187 = vld [vmem:[#allocation5 + $0x310] sm:$0xff]
    %v188 = vld [vmem:[#allocation5 + $0x318] sm:$0xff]
    %v189 = vld [vmem:[#allocation5 + $0x320] sm:$0xff]
    %v190 = vld [vmem:[#allocation5 + $0x328] sm:$0xff]
    %v191 = vld [vmem:[#allocation5 + $0x330] sm:$0xff]
    %v192 = vld [vmem:[#allocation5 + $0x338] sm:$0xff]
    %v193 = vld [vmem:[#allocation5 + $0x340] sm:$0xff]
    %v194 = vld [vmem:[#allocation5 + $0x348] sm:$0xff]
    %v195 = vld [vmem:[#allocation5 + $0x350] sm:$0xff]
    %v196 = vld [vmem:[#allocation5 + $0x358] sm:$0xff]
    %v197 = vld [vmem:[#allocation5 + $0x360] sm:$0xff]
    %v198 = vld [vmem:[#allocation5 + $0x368] sm:$0xff]
    %v199 = vld [vmem:[#allocation5 + $0x370] sm:$0xff]
    %v200 = vld [vmem:[#allocation5 + $0x378] sm:$0xff]
    %v201 = vld [vmem:[#allocation5 + $0x380] sm:$0xff]
    %v202 = vld [vmem:[#allocation5 + $0x388] sm:$0xff]
    %v203 = vld [vmem:[#allocation5 + $0x390] sm:$0xff]
    %v204 = vld [vmem:[#allocation5 + $0x398] sm:$0xff]
    %v205 = vld [vmem:[#allocation5 + $0x3a0] sm:$0xff]
    %v206 = vld [vmem:[#allocation5 + $0x3a8] sm:$0xff]
    %v207 = vld [vmem:[#allocation5 + $0x3b0] sm:$0xff]
    %v208 = vld [vmem:[#allocation5 + $0x3b8] sm:$0xff]
    %v209 = vld [vmem:[#allocation5 + $0x3c0] sm:$0xff]
    %v210 = vld [vmem:[#allocation5 + $0x3c8] sm:$0xff]
    %v211 = vld [vmem:[#allocation5 + $0x3d0] sm:$0xff]
    %v212 = vld [vmem:[#allocation5 + $0x3d8] sm:$0xff]
    %v213 = vld [vmem:[#allocation5 + $0x3e0] sm:$0xff]
    %v214 = vld [vmem:[#allocation5 + $0x3e8] sm:$0xff]
    %v215 = vld [vmem:[#allocation5 + $0x3f0] sm:$0xff]
    %v216 = vld [vmem:[#allocation5 + $0x3f8] sm:$0xff]
    %v217 = vld [vmem:[#allocation5 + $0x400] sm:$0xff]
    %v218 = vld [vmem:[#allocation5 + $0x408] sm:$0xff]
    %v219 = vld [vmem:[#allocation5 + $0x410] sm:$0xff]
    %v220 = vld [vmem:[#allocation5 + $0x418] sm:$0xff]
    %v221 = vld [vmem:[#allocation5 + $0x420] sm:$0xff]
    %v222 = vld [vmem:[#allocation5 + $0x428] sm:$0xff]
    %v223 = vld [vmem:[#allocation5 + $0x430] sm:$0xff]
    %v224 = vld [vmem:[#allocation5 + $0x438] sm:$0xff]
    %v225 = vld [vmem:[#allocation5 + $0x440] sm:$0xff]
    %v226 = vld [vmem:[#allocation5 + $0x448] sm:$0xff]
    %v227 = vld [vmem:[#allocation5 + $0x450] sm:$0xff]
    %v228 = vld [vmem:[#allocation5 + $0x458] sm:$0xff]
    %v229 = vld [vmem:[#allocation5 + $0x460] sm:$0xff]
    %v230 = vld [vmem:[#allocation5 + $0x468] sm:$0xff]
    %v231 = vld [vmem:[#allocation5 + $0x470] sm:$0xff]
    %v232 = vld [vmem:[#allocation5 + $0x478] sm:$0xff]
    %v233 = vld [vmem:[#allocation5 + $0x480] sm:$0xff]
    %v234 = vld [vmem:[#allocation5 + $0x488] sm:$0xff]
    %v235 = vld [vmem:[#allocation5 + $0x490] sm:$0xff]
    %v236 = vld [vmem:[#allocation5 + $0x498] sm:$0xff]
    %v237 = vld [vmem:[#allocation5 + $0x4a0] sm:$0xff]
    %v238 = vld [vmem:[#allocation5 + $0x4a8] sm:$0xff]
    %v239 = vld [vmem:[#allocation5 + $0x4b0] sm:$0xff]
    %v240 = vld [vmem:[#allocation5 + $0x4b8] sm:$0xff]
    %v241 = vld [vmem:[#allocation5 + $0x4c0] sm:$0xff]
    %v242 = vld [vmem:[#allocation5 + $0x4c8] sm:$0xff]
    %v243 = vld [vmem:[#allocation5 + $0x4d0] sm:$0xff]
    %v244 = vld [vmem:[#allocation5 + $0x4d8] sm:$0xff]
    %v245 = vld [vmem:[#allocation5 + $0x4e0] sm:$0xff]
    %v246 = vld [vmem:[#allocation5 + $0x4e8] sm:$0xff]
    %v247 = vld [vmem:[#allocation5 + $0x4f0] sm:$0xff]
    %v248 = vld [vmem:[#allocation5 + $0x4f8] sm:$0xff]
    %v249 = vld [vmem:[#allocation5 + $0x500] sm:$0xff]
    %v250 = vld [vmem:[#allocation5 + $0x508] sm:$0xff]
    %v251 = vld [vmem:[#allocation5 + $0x510] sm:$0xff]
    %v252 = vld [vmem:[#allocation5 + $0x518] sm:$0xff]
    %v253 = vld [vmem:[#allocation5 + $0x520] sm:$0xff]
    %v254 = vld [vmem:[#allocation5 + $0x528] sm:$0xff]
    %v255 = vld [vmem:[#allocation5 + $0x530] sm:$0xff]
    %v256 = vld [vmem:[#allocation5 + $0x538] sm:$0xff]
    %v257 = vld [vmem:[#allocation5 + $0x540] sm:$0xff]
    %v258 = vld [vmem:[#allocation5 + $0x548] sm:$0xff]
    %v259 = vld [vmem:[#allocation5 + $0x550] sm:$0xff]
    %v260 = vld [vmem:[#allocation5 + $0x558] sm:$0xff]
    %v261 = vld [vmem:[#allocation5 + $0x560] sm:$0xff]
    %v262 = vld [vmem:[#allocation5 + $0x568] sm:$0xff]
    %v263 = vld [vmem:[#allocation5 + $0x570] sm:$0xff]
    %v264 = vld [vmem:[#allocation5 + $0x578] sm:$0xff]
    %v265 = vld [vmem:[#allocation5 + $0x580] sm:$0xff]
    %v266 = vld [vmem:[#allocation5 + $0x588] sm:$0xff]
    %v267 = vld [vmem:[#allocation5 + $0x590] sm:$0xff]
    %v268 = vld [vmem:[#allocation5 + $0x598] sm:$0xff]
    %v269 = vld [vmem:[#allocation5 + $0x5a0] sm:$0xff]
    %v270 = vld [vmem:[#allocation5 + $0x5a8] sm:$0xff]
    %v271 = vld [vmem:[#allocation5 + $0x5b0] sm:$0xff]
    %v272 = vld [vmem:[#allocation5 + $0x5b8] sm:$0xff]
    %v273 = vld [vmem:[#allocation5 + $0x5c0] sm:$0xff]
    %v274 = vld [vmem:[#allocation5 + $0x5c8] sm:$0xff]
    %v275 = vld [vmem:[#allocation5 + $0x5d0] sm:$0xff]
    %v276 = vld [vmem:[#allocation5 + $0x5d8] sm:$0xff]
    %v277 = vld [vmem:[#allocation5 + $0x5e0] sm:$0xff]
    %v278 = vld [vmem:[#allocation5 + $0x5e8] sm:$0xff]
    %v279 = vld [vmem:[#allocation5 + $0x5f0] sm:$0xff]
    %v280 = vld [vmem:[#allocation5 + $0x5f8] sm:$0xff]
    %v281 = vld [vmem:[#allocation5 + $0x600] sm:$0xff]
    %v282 = vld [vmem:[#allocation5 + $0x608] sm:$0xff]
    %v283 = vld [vmem:[#allocation5 + $0x610] sm:$0xff]
    %v284 = vld [vmem:[#allocation5 + $0x618] sm:$0xff]
    %v285 = vld [vmem:[#allocation5 + $0x620] sm:$0xff]
    %v286 = vld [vmem:[#allocation5 + $0x628] sm:$0xff]
    %v287 = vld [vmem:[#allocation5 + $0x630] sm:$0xff]
    %v288 = vld [vmem:[#allocation5 + $0x638] sm:$0xff]
    %v289 = vld [vmem:[#allocation5 + $0x640] sm:$0xff]
    %v290 = vld [vmem:[#allocation5 + $0x648] sm:$0xff]
    %v291 = vld [vmem:[#allocation5 + $0x650] sm:$0xff]
    %v292 = vld [vmem:[#allocation5 + $0x658] sm:$0xff]
    %v293 = vld [vmem:[#allocation5 + $0x660] sm:$0xff]
    %v294 = vld [vmem:[#allocation5 + $0x668] sm:$0xff]
    %v295 = vld [vmem:[#allocation5 + $0x670] sm:$0xff]
    %v296 = vld [vmem:[#allocation5 + $0x678] sm:$0xff]
    %v297 = vld [vmem:[#allocation5 + $0x680] sm:$0xff]
    %v298 = vld [vmem:[#allocation5 + $0x688] sm:$0xff]
    %v299 = vld [vmem:[#allocation5 + $0x690] sm:$0xff]
    %v300 = vld [vmem:[#allocation5 + $0x698] sm:$0xff]
    %v301 = vld [vmem:[#allocation5 + $0x6a0] sm:$0xff]
    %v302 = vld [vmem:[#allocation5 + $0x6a8] sm:$0xff]
    %v303 = vld [vmem:[#allocation5 + $0x6b0] sm:$0xff]
    %v304 = vld [vmem:[#allocation5 + $0x6b8] sm:$0xff]
    %v305 = vld [vmem:[#allocation5 + $0x6c0] sm:$0xff]
    %v306 = vld [vmem:[#allocation5 + $0x6c8] sm:$0xff]
    %v307 = vld [vmem:[#allocation5 + $0x6d0] sm:$0xff]
    %v308 = vld [vmem:[#allocation5 + $0x6d8] sm:$0xff]
    %v309 = vld [vmem:[#allocation5 + $0x6e0] sm:$0xff]
    %v310 = vld [vmem:[#allocation5 + $0x6e8] sm:$0xff]
    %v311 = vld [vmem:[#allocation5 + $0x6f0] sm:$0xff]
    %v312 = vld [vmem:[#allocation5 + $0x6f8] sm:$0xff]
    %v313 = vld [vmem:[#allocation5 + $0x700] sm:$0xff]
    %v314 = vld [vmem:[#allocation5 + $0x708] sm:$0xff]
    %v315 = vld [vmem:[#allocation5 + $0x710] sm:$0xff]
    %v316 = vld [vmem:[#allocation5 + $0x718] sm:$0xff]
    %v317 = vld [vmem:[#allocation5 + $0x720] sm:$0xff]
    %v318 = vld [vmem:[#allocation5 + $0x728] sm:$0xff]
    %v319 = vld [vmem:[#allocation5 + $0x730] sm:$0xff]
    %v320 = vld [vmem:[#allocation5 + $0x738] sm:$0xff]
    %v321 = vld [vmem:[#allocation5 + $0x740] sm:$0xff]
    %v322 = vld [vmem:[#allocation5 + $0x748] sm:$0xff]
    %v323 = vld [vmem:[#allocation5 + $0x750] sm:$0xff]
    %v324 = vld [vmem:[#allocation5 + $0x758] sm:$0xff]
    %v325 = vld [vmem:[#allocation5 + $0x760] sm:$0xff]
    %v326 = vld [vmem:[#allocation5 + $0x768] sm:$0xff]
    %v327 = vld [vmem:[#allocation5 + $0x770] sm:$0xff]
    %v328 = vld [vmem:[#allocation5 + $0x778] sm:$0xff]
    %v329 = vld [vmem:[#allocation5 + $0x780] sm:$0xff]
    %v330 = vld [vmem:[#allocation5 + $0x788] sm:$0xff]
    %v331 = vld [vmem:[#allocation5 + $0x790] sm:$0xff]
    %v332 = vld [vmem:[#allocation5 + $0x798] sm:$0xff]
    %v333 = vld [vmem:[#allocation5 + $0x7a0] sm:$0xff]
    %v334 = vld [vmem:[#allocation5 + $0x7a8] sm:$0xff]
    %v335 = vld [vmem:[#allocation5 + $0x7b0] sm:$0xff]
    %v336 = vld [vmem:[#allocation5 + $0x7b8] sm:$0xff]
    %v337 = vld [vmem:[#allocation5 + $0x7c0] sm:$0xff]
    %v338 = vld [vmem:[#allocation5 + $0x7c8] sm:$0xff]
    %v339 = vld [vmem:[#allocation5 + $0x7d0] sm:$0xff]
    %v340 = vld [vmem:[#allocation5 + $0x7d8] sm:$0xff]
    %v341 = vld [vmem:[#allocation5 + $0x7e0] sm:$0xff]
    %v342 = vld [vmem:[#allocation5 + $0x7e8] sm:$0xff]
    %v343 = vld [vmem:[#allocation5 + $0x7f0] sm:$0xff]
    %v344 = vld [vmem:[#allocation5 + $0x7f8] sm:$0xff]
    %v345 = vld [vmem:[#allocation7] sm:$0xf]
    %v347 = vlaneseq
    %v348 = vshrl.u32 %v347, 7
    %v349 = vsub.s32 0, %v348
    %v350 = vrot.slane %v345, %v349
    %v351 = vlaneseq
    %v352 = vshrl.u32 %v351, 7
    %v353 = vsub.s32 1, %v352
    %v354 = vrot.slane %v345, %v353
    %v355 = vlaneseq
    %v356 = vshrl.u32 %v355, 7
    %v357 = vsub.s32 2, %v356
    %v358 = vrot.slane %v345, %v357
    %v359 = vlaneseq
    %v360 = vshrl.u32 %v359, 7
    %v361 = vsub.s32 3, %v360
    %v362 = vrot.slane %v345, %v361
    %v623 = vunpack.c.l.b16 %v89
    %v624 = vunpack.c.h.b16 %v89
    %v625 = vunpack.c.l.b16 %v90
    %v626 = vunpack.c.h.b16 %v90
    %v627 = vunpack.c.l.b16 %v91
    %v628 = vunpack.c.h.b16 %v91
    %v629 = vunpack.c.l.b16 %v92
    %v630 = vunpack.c.h.b16 %v92
    %v631 = vunpack.c.l.b16 %v93
    %v632 = vunpack.c.h.b16 %v93
    %v633 = vunpack.c.l.b16 %v94
    %v634 = vunpack.c.h.b16 %v94
    %v635 = vunpack.c.l.b16 %v95
    %v636 = vunpack.c.h.b16 %v95
    %v637 = vunpack.c.l.b16 %v96
    %v638 = vunpack.c.h.b16 %v96
    %v639 = vunpack.c.l.b16 %v97
    %v640 = vunpack.c.h.b16 %v97
    %v641 = vunpack.c.l.b16 %v98
    %v642 = vunpack.c.h.b16 %v98
    %v643 = vunpack.c.l.b16 %v99
    %v644 = vunpack.c.h.b16 %v99
    %v645 = vunpack.c.l.b16 %v100
    %v646 = vunpack.c.h.b16 %v100
    %v647 = vunpack.c.l.b16 %v101
    %v648 = vunpack.c.h.b16 %v101
    %v649 = vunpack.c.l.b16 %v102
    %v650 = vunpack.c.h.b16 %v102
    %v651 = vunpack.c.l.b16 %v103
    %v652 = vunpack.c.h.b16 %v103
    %v653 = vunpack.c.l.b16 %v104
    %v654 = vunpack.c.h.b16 %v104
    %v655 = vunpack.c.l.b16 %v105
    %v656 = vunpack.c.h.b16 %v105
    %v657 = vunpack.c.l.b16 %v106
    %v658 = vunpack.c.h.b16 %v106
    %v659 = vunpack.c.l.b16 %v107
    %v660 = vunpack.c.h.b16 %v107
    %v661 = vunpack.c.l.b16 %v108
    %v662 = vunpack.c.h.b16 %v108
    %v663 = vunpack.c.l.b16 %v109
    %v664 = vunpack.c.h.b16 %v109
    %v665 = vunpack.c.l.b16 %v110
    %v666 = vunpack.c.h.b16 %v110
    %v667 = vunpack.c.l.b16 %v111
    %v668 = vunpack.c.h.b16 %v111
    %v669 = vunpack.c.l.b16 %v112
    %v670 = vunpack.c.h.b16 %v112
    %v671 = vunpack.c.l.b16 %v113
    %v672 = vunpack.c.h.b16 %v113
    %v673 = vunpack.c.l.b16 %v114
    %v674 = vunpack.c.h.b16 %v114
    %v675 = vunpack.c.l.b16 %v115
    %v676 = vunpack.c.h.b16 %v115
    %v677 = vunpack.c.l.b16 %v116
    %v678 = vunpack.c.h.b16 %v116
    %v679 = vunpack.c.l.b16 %v117
    %v680 = vunpack.c.h.b16 %v117
    %v681 = vunpack.c.l.b16 %v118
    %v682 = vunpack.c.h.b16 %v118
    %v683 = vunpack.c.l.b16 %v119
    %v684 = vunpack.c.h.b16 %v119
    %v685 = vunpack.c.l.b16 %v120
    %v686 = vunpack.c.h.b16 %v120
    %v687 = vunpack.c.l.b16 %v121
    %v688 = vunpack.c.h.b16 %v121
    %v689 = vunpack.c.l.b16 %v122
    %v690 = vunpack.c.h.b16 %v122
    %v691 = vunpack.c.l.b16 %v123
    %v692 = vunpack.c.h.b16 %v123
    %v693 = vunpack.c.l.b16 %v124
    %v694 = vunpack.c.h.b16 %v124
    %v695 = vunpack.c.l.b16 %v125
    %v696 = vunpack.c.h.b16 %v125
    %v697 = vunpack.c.l.b16 %v126
    %v698 = vunpack.c.h.b16 %v126
    %v699 = vunpack.c.l.b16 %v127
    %v700 = vunpack.c.h.b16 %v127
    %v701 = vunpack.c.l.b16 %v128
    %v702 = vunpack.c.h.b16 %v128
    %v703 = vunpack.c.l.b16 %v129
    %v704 = vunpack.c.h.b16 %v129
    %v705 = vunpack.c.l.b16 %v130
    %v706 = vunpack.c.h.b16 %v130
    %v707 = vunpack.c.l.b16 %v131
    %v708 = vunpack.c.h.b16 %v131
    %v709 = vunpack.c.l.b16 %v132
    %v710 = vunpack.c.h.b16 %v132
    %v711 = vunpack.c.l.b16 %v133
    %v712 = vunpack.c.h.b16 %v133
    %v713 = vunpack.c.l.b16 %v134
    %v714 = vunpack.c.h.b16 %v134
    %v715 = vunpack.c.l.b16 %v135
    %v716 = vunpack.c.h.b16 %v135
    %v717 = vunpack.c.l.b16 %v136
    %v718 = vunpack.c.h.b16 %v136
    %v719 = vunpack.c.l.b16 %v137
    %v720 = vunpack.c.h.b16 %v137
    %v721 = vunpack.c.l.b16 %v138
    %v722 = vunpack.c.h.b16 %v138
    %v723 = vunpack.c.l.b16 %v139
    %v724 = vunpack.c.h.b16 %v139
    %v725 = vunpack.c.l.b16 %v140
    %v726 = vunpack.c.h.b16 %v140
    %v727 = vunpack.c.l.b16 %v141
    %v728 = vunpack.c.h.b16 %v141
    %v729 = vunpack.c.l.b16 %v142
    %v730 = vunpack.c.h.b16 %v142
    %v731 = vunpack.c.l.b16 %v143
    %v732 = vunpack.c.h.b16 %v143
    %v733 = vunpack.c.l.b16 %v144
    %v734 = vunpack.c.h.b16 %v144
    %v735 = vunpack.c.l.b16 %v145
    %v736 = vunpack.c.h.b16 %v145
    %v737 = vunpack.c.l.b16 %v146
    %v738 = vunpack.c.h.b16 %v146
    %v739 = vunpack.c.l.b16 %v147
    %v740 = vunpack.c.h.b16 %v147
    %v741 = vunpack.c.l.b16 %v148
    %v742 = vunpack.c.h.b16 %v148
    %v743 = vunpack.c.l.b16 %v149
    %v744 = vunpack.c.h.b16 %v149
    %v745 = vunpack.c.l.b16 %v150
    %v746 = vunpack.c.h.b16 %v150
    %v747 = vunpack.c.l.b16 %v151
    %v748 = vunpack.c.h.b16 %v151
    %v749 = vunpack.c.l.b16 %v152
    %v750 = vunpack.c.h.b16 %v152
    %v751 = vunpack.c.l.b16 %v153
    %v752 = vunpack.c.h.b16 %v153
    %v753 = vunpack.c.l.b16 %v154
    %v754 = vunpack.c.h.b16 %v154
    %v755 = vunpack.c.l.b16 %v155
    %v756 = vunpack.c.h.b16 %v155
    %v757 = vunpack.c.l.b16 %v156
    %v758 = vunpack.c.h.b16 %v156
    %v759 = vunpack.c.l.b16 %v157
    %v760 = vunpack.c.h.b16 %v157
    %v761 = vunpack.c.l.b16 %v158
    %v762 = vunpack.c.h.b16 %v158
    %v763 = vunpack.c.l.b16 %v159
    %v764 = vunpack.c.h.b16 %v159
    %v765 = vunpack.c.l.b16 %v160
    %v766 = vunpack.c.h.b16 %v160
    %v767 = vunpack.c.l.b16 %v161
    %v768 = vunpack.c.h.b16 %v161
    %v769 = vunpack.c.l.b16 %v162
    %v770 = vunpack.c.h.b16 %v162
    %v771 = vunpack.c.l.b16 %v163
    %v772 = vunpack.c.h.b16 %v163
    %v773 = vunpack.c.l.b16 %v164
    %v774 = vunpack.c.h.b16 %v164
    %v775 = vunpack.c.l.b16 %v165
    %v776 = vunpack.c.h.b16 %v165
    %v777 = vunpack.c.l.b16 %v166
    %v778 = vunpack.c.h.b16 %v166
    %v779 = vunpack.c.l.b16 %v167
    %v780 = vunpack.c.h.b16 %v167
    %v781 = vunpack.c.l.b16 %v168
    %v782 = vunpack.c.h.b16 %v168
    %v783 = vunpack.c.l.b16 %v169
    %v784 = vunpack.c.h.b16 %v169
    %v785 = vunpack.c.l.b16 %v170
    %v786 = vunpack.c.h.b16 %v170
    %v787 = vunpack.c.l.b16 %v171
    %v788 = vunpack.c.h.b16 %v171
    %v789 = vunpack.c.l.b16 %v172
    %v790 = vunpack.c.h.b16 %v172
    %v791 = vunpack.c.l.b16 %v173
    %v792 = vunpack.c.h.b16 %v173
    %v793 = vunpack.c.l.b16 %v174
    %v794 = vunpack.c.h.b16 %v174
    %v795 = vunpack.c.l.b16 %v175
    %v796 = vunpack.c.h.b16 %v175
    %v797 = vunpack.c.l.b16 %v176
    %v798 = vunpack.c.h.b16 %v176
    %v799 = vunpack.c.l.b16 %v177
    %v800 = vunpack.c.h.b16 %v177
    %v801 = vunpack.c.l.b16 %v178
    %v802 = vunpack.c.h.b16 %v178
    %v803 = vunpack.c.l.b16 %v179
    %v804 = vunpack.c.h.b16 %v179
    %v805 = vunpack.c.l.b16 %v180
    %v806 = vunpack.c.h.b16 %v180
    %v807 = vunpack.c.l.b16 %v181
    %v808 = vunpack.c.h.b16 %v181
    %v809 = vunpack.c.l.b16 %v182
    %v810 = vunpack.c.h.b16 %v182
    %v811 = vunpack.c.l.b16 %v183
    %v812 = vunpack.c.h.b16 %v183
    %v813 = vunpack.c.l.b16 %v184
    %v814 = vunpack.c.h.b16 %v184
    %v815 = vunpack.c.l.b16 %v185
    %v816 = vunpack.c.h.b16 %v185
    %v817 = vunpack.c.l.b16 %v186
    %v818 = vunpack.c.h.b16 %v186
    %v819 = vunpack.c.l.b16 %v187
    %v820 = vunpack.c.h.b16 %v187
    %v821 = vunpack.c.l.b16 %v188
    %v822 = vunpack.c.h.b16 %v188
    %v823 = vunpack.c.l.b16 %v189
    %v824 = vunpack.c.h.b16 %v189
    %v825 = vunpack.c.l.b16 %v190
    %v826 = vunpack.c.h.b16 %v190
    %v827 = vunpack.c.l.b16 %v191
    %v828 = vunpack.c.h.b16 %v191
    %v829 = vunpack.c.l.b16 %v192
    %v830 = vunpack.c.h.b16 %v192
    %v831 = vunpack.c.l.b16 %v193
    %v832 = vunpack.c.h.b16 %v193
    %v833 = vunpack.c.l.b16 %v194
    %v834 = vunpack.c.h.b16 %v194
    %v835 = vunpack.c.l.b16 %v195
    %v836 = vunpack.c.h.b16 %v195
    %v837 = vunpack.c.l.b16 %v196
    %v838 = vunpack.c.h.b16 %v196
    %v839 = vunpack.c.l.b16 %v197
    %v840 = vunpack.c.h.b16 %v197
    %v841 = vunpack.c.l.b16 %v198
    %v842 = vunpack.c.h.b16 %v198
    %v843 = vunpack.c.l.b16 %v199
    %v844 = vunpack.c.h.b16 %v199
    %v845 = vunpack.c.l.b16 %v200
    %v846 = vunpack.c.h.b16 %v200
    %v847 = vunpack.c.l.b16 %v201
    %v848 = vunpack.c.h.b16 %v201
    %v849 = vunpack.c.l.b16 %v202
    %v850 = vunpack.c.h.b16 %v202
    %v851 = vunpack.c.l.b16 %v203
    %v852 = vunpack.c.h.b16 %v203
    %v853 = vunpack.c.l.b16 %v204
    %v854 = vunpack.c.h.b16 %v204
    %v855 = vunpack.c.l.b16 %v205
    %v856 = vunpack.c.h.b16 %v205
    %v857 = vunpack.c.l.b16 %v206
    %v858 = vunpack.c.h.b16 %v206
    %v859 = vunpack.c.l.b16 %v207
    %v860 = vunpack.c.h.b16 %v207
    %v861 = vunpack.c.l.b16 %v208
    %v862 = vunpack.c.h.b16 %v208
    %v863 = vunpack.c.l.b16 %v209
    %v864 = vunpack.c.h.b16 %v209
    %v865 = vunpack.c.l.b16 %v210
    %v866 = vunpack.c.h.b16 %v210
    %v867 = vunpack.c.l.b16 %v211
    %v868 = vunpack.c.h.b16 %v211
    %v869 = vunpack.c.l.b16 %v212
    %v870 = vunpack.c.h.b16 %v212
    %v871 = vunpack.c.l.b16 %v213
    %v872 = vunpack.c.h.b16 %v213
    %v873 = vunpack.c.l.b16 %v214
    %v874 = vunpack.c.h.b16 %v214
    %v875 = vunpack.c.l.b16 %v215
    %v876 = vunpack.c.h.b16 %v215
    %v877 = vunpack.c.l.b16 %v216
    %v878 = vunpack.c.h.b16 %v216
    %v879 = vunpack.c.l.b16 %v217
    %v880 = vunpack.c.h.b16 %v217
    %v881 = vunpack.c.l.b16 %v218
    %v882 = vunpack.c.h.b16 %v218
    %v883 = vunpack.c.l.b16 %v219
    %v884 = vunpack.c.h.b16 %v219
    %v885 = vunpack.c.l.b16 %v220
    %v886 = vunpack.c.h.b16 %v220
    %v887 = vunpack.c.l.b16 %v221
    %v888 = vunpack.c.h.b16 %v221
    %v889 = vunpack.c.l.b16 %v222
    %v890 = vunpack.c.h.b16 %v222
    %v891 = vunpack.c.l.b16 %v223
    %v892 = vunpack.c.h.b16 %v223
    %v893 = vunpack.c.l.b16 %v224
    %v894 = vunpack.c.h.b16 %v224
    %v895 = vunpack.c.l.b16 %v225
    %v896 = vunpack.c.h.b16 %v225
    %v897 = vunpack.c.l.b16 %v226
    %v898 = vunpack.c.h.b16 %v226
    %v899 = vunpack.c.l.b16 %v227
    %v900 = vunpack.c.h.b16 %v227
    %v901 = vunpack.c.l.b16 %v228
    %v902 = vunpack.c.h.b16 %v228
    %v903 = vunpack.c.l.b16 %v229
    %v904 = vunpack.c.h.b16 %v229
    %v905 = vunpack.c.l.b16 %v230
    %v906 = vunpack.c.h.b16 %v230
    %v907 = vunpack.c.l.b16 %v231
    %v908 = vunpack.c.h.b16 %v231
    %v909 = vunpack.c.l.b16 %v232
    %v910 = vunpack.c.h.b16 %v232
    %v911 = vunpack.c.l.b16 %v233
    %v912 = vunpack.c.h.b16 %v233
    %v913 = vunpack.c.l.b16 %v234
    %v914 = vunpack.c.h.b16 %v234
    %v915 = vunpack.c.l.b16 %v235
    %v916 = vunpack.c.h.b16 %v235
    %v917 = vunpack.c.l.b16 %v236
    %v918 = vunpack.c.h.b16 %v236
    %v919 = vunpack.c.l.b16 %v237
    %v920 = vunpack.c.h.b16 %v237
    %v921 = vunpack.c.l.b16 %v238
    %v922 = vunpack.c.h.b16 %v238
    %v923 = vunpack.c.l.b16 %v239
    %v924 = vunpack.c.h.b16 %v239
    %v925 = vunpack.c.l.b16 %v240
    %v926 = vunpack.c.h.b16 %v240
    %v927 = vunpack.c.l.b16 %v241
    %v928 = vunpack.c.h.b16 %v241
    %v929 = vunpack.c.l.b16 %v242
    %v930 = vunpack.c.h.b16 %v242
    %v931 = vunpack.c.l.b16 %v243
    %v932 = vunpack.c.h.b16 %v243
    %v933 = vunpack.c.l.b16 %v244
    %v934 = vunpack.c.h.b16 %v244
    %v935 = vunpack.c.l.b16 %v245
    %v936 = vunpack.c.h.b16 %v245
    %v937 = vunpack.c.l.b16 %v246
    %v938 = vunpack.c.h.b16 %v246
    %v939 = vunpack.c.l.b16 %v247
    %v940 = vunpack.c.h.b16 %v247
    %v941 = vunpack.c.l.b16 %v248
    %v942 = vunpack.c.h.b16 %v248
    %v943 = vunpack.c.l.b16 %v249
    %v944 = vunpack.c.h.b16 %v249
    %v945 = vunpack.c.l.b16 %v250
    %v946 = vunpack.c.h.b16 %v250
    %v947 = vunpack.c.l.b16 %v251
    %v948 = vunpack.c.h.b16 %v251
    %v949 = vunpack.c.l.b16 %v252
    %v950 = vunpack.c.h.b16 %v252
    %v951 = vunpack.c.l.b16 %v253
    %v952 = vunpack.c.h.b16 %v253
    %v953 = vunpack.c.l.b16 %v254
    %v954 = vunpack.c.h.b16 %v254
    %v955 = vunpack.c.l.b16 %v255
    %v956 = vunpack.c.h.b16 %v255
    %v957 = vunpack.c.l.b16 %v256
    %v958 = vunpack.c.h.b16 %v256
    %v959 = vunpack.c.l.b16 %v257
    %v960 = vunpack.c.h.b16 %v257
    %v961 = vunpack.c.l.b16 %v258
    %v962 = vunpack.c.h.b16 %v258
    %v963 = vunpack.c.l.b16 %v259
    %v964 = vunpack.c.h.b16 %v259
    %v965 = vunpack.c.l.b16 %v260
    %v966 = vunpack.c.h.b16 %v260
    %v967 = vunpack.c.l.b16 %v261
    %v968 = vunpack.c.h.b16 %v261
    %v969 = vunpack.c.l.b16 %v262
    %v970 = vunpack.c.h.b16 %v262
    %v971 = vunpack.c.l.b16 %v263
    %v972 = vunpack.c.h.b16 %v263
    %v973 = vunpack.c.l.b16 %v264
    %v974 = vunpack.c.h.b16 %v264
    %v975 = vunpack.c.l.b16 %v265
    %v976 = vunpack.c.h.b16 %v265
    %v977 = vunpack.c.l.b16 %v266
    %v978 = vunpack.c.h.b16 %v266
    %v979 = vunpack.c.l.b16 %v267
    %v980 = vunpack.c.h.b16 %v267
    %v981 = vunpack.c.l.b16 %v268
    %v982 = vunpack.c.h.b16 %v268
    %v983 = vunpack.c.l.b16 %v269
    %v984 = vunpack.c.h.b16 %v269
    %v985 = vunpack.c.l.b16 %v270
    %v986 = vunpack.c.h.b16 %v270
    %v987 = vunpack.c.l.b16 %v271
    %v988 = vunpack.c.h.b16 %v271
    %v989 = vunpack.c.l.b16 %v272
    %v990 = vunpack.c.h.b16 %v272
    %v991 = vunpack.c.l.b16 %v273
    %v992 = vunpack.c.h.b16 %v273
    %v993 = vunpack.c.l.b16 %v274
    %v994 = vunpack.c.h.b16 %v274
    %v995 = vunpack.c.l.b16 %v275
    %v996 = vunpack.c.h.b16 %v275
    %v997 = vunpack.c.l.b16 %v276
    %v998 = vunpack.c.h.b16 %v276
    %v999 = vunpack.c.l.b16 %v277
    %v1000 = vunpack.c.h.b16 %v277
    %v1001 = vunpack.c.l.b16 %v278
    %v1002 = vunpack.c.h.b16 %v278
    %v1003 = vunpack.c.l.b16 %v279
    %v1004 = vunpack.c.h.b16 %v279
    %v1005 = vunpack.c.l.b16 %v280
    %v1006 = vunpack.c.h.b16 %v280
    %v1007 = vunpack.c.l.b16 %v281
    %v1008 = vunpack.c.h.b16 %v281
    %v1009 = vunpack.c.l.b16 %v282
    %v1010 = vunpack.c.h.b16 %v282
    %v1011 = vunpack.c.l.b16 %v283
    %v1012 = vunpack.c.h.b16 %v283
    %v1013 = vunpack.c.l.b16 %v284
    %v1014 = vunpack.c.h.b16 %v284
    %v1015 = vunpack.c.l.b16 %v285
    %v1016 = vunpack.c.h.b16 %v285
    %v1017 = vunpack.c.l.b16 %v286
    %v1018 = vunpack.c.h.b16 %v286
    %v1019 = vunpack.c.l.b16 %v287
    %v1020 = vunpack.c.h.b16 %v287
    %v1021 = vunpack.c.l.b16 %v288
    %v1022 = vunpack.c.h.b16 %v288
    %v1023 = vunpack.c.l.b16 %v289
    %v1024 = vunpack.c.h.b16 %v289
    %v1025 = vunpack.c.l.b16 %v290
    %v1026 = vunpack.c.h.b16 %v290
    %v1027 = vunpack.c.l.b16 %v291
    %v1028 = vunpack.c.h.b16 %v291
    %v1029 = vunpack.c.l.b16 %v292
    %v1030 = vunpack.c.h.b16 %v292
    %v1031 = vunpack.c.l.b16 %v293
    %v1032 = vunpack.c.h.b16 %v293
    %v1033 = vunpack.c.l.b16 %v294
    %v1034 = vunpack.c.h.b16 %v294
    %v1035 = vunpack.c.l.b16 %v295
    %v1036 = vunpack.c.h.b16 %v295
    %v1037 = vunpack.c.l.b16 %v296
    %v1038 = vunpack.c.h.b16 %v296
    %v1039 = vunpack.c.l.b16 %v297
    %v1040 = vunpack.c.h.b16 %v297
    %v1041 = vunpack.c.l.b16 %v298
    %v1042 = vunpack.c.h.b16 %v298
    %v1043 = vunpack.c.l.b16 %v299
    %v1044 = vunpack.c.h.b16 %v299
    %v1045 = vunpack.c.l.b16 %v300
    %v1046 = vunpack.c.h.b16 %v300
    %v1047 = vunpack.c.l.b16 %v301
    %v1048 = vunpack.c.h.b16 %v301
    %v1049 = vunpack.c.l.b16 %v302
    %v1050 = vunpack.c.h.b16 %v302
    %v1051 = vunpack.c.l.b16 %v303
    %v1052 = vunpack.c.h.b16 %v303
    %v1053 = vunpack.c.l.b16 %v304
    %v1054 = vunpack.c.h.b16 %v304
    %v1055 = vunpack.c.l.b16 %v305
    %v1056 = vunpack.c.h.b16 %v305
    %v1057 = vunpack.c.l.b16 %v306
    %v1058 = vunpack.c.h.b16 %v306
    %v1059 = vunpack.c.l.b16 %v307
    %v1060 = vunpack.c.h.b16 %v307
    %v1061 = vunpack.c.l.b16 %v308
    %v1062 = vunpack.c.h.b16 %v308
    %v1063 = vunpack.c.l.b16 %v309
    %v1064 = vunpack.c.h.b16 %v309
    %v1065 = vunpack.c.l.b16 %v310
    %v1066 = vunpack.c.h.b16 %v310
    %v1067 = vunpack.c.l.b16 %v311
    %v1068 = vunpack.c.h.b16 %v311
    %v1069 = vunpack.c.l.b16 %v312
    %v1070 = vunpack.c.h.b16 %v312
    %v1071 = vunpack.c.l.b16 %v313
    %v1072 = vunpack.c.h.b16 %v313
    %v1073 = vunpack.c.l.b16 %v314
    %v1074 = vunpack.c.h.b16 %v314
    %v1075 = vunpack.c.l.b16 %v315
    %v1076 = vunpack.c.h.b16 %v315
    %v1077 = vunpack.c.l.b16 %v316
    %v1078 = vunpack.c.h.b16 %v316
    %v1079 = vunpack.c.l.b16 %v317
    %v1080 = vunpack.c.h.b16 %v317
    %v1081 = vunpack.c.l.b16 %v318
    %v1082 = vunpack.c.h.b16 %v318
    %v1083 = vunpack.c.l.b16 %v319
    %v1084 = vunpack.c.h.b16 %v319
    %v1085 = vunpack.c.l.b16 %v320
    %v1086 = vunpack.c.h.b16 %v320
    %v1087 = vunpack.c.l.b16 %v321
    %v1088 = vunpack.c.h.b16 %v321
    %v1089 = vunpack.c.l.b16 %v322
    %v1090 = vunpack.c.h.b16 %v322
    %v1091 = vunpack.c.l.b16 %v323
    %v1092 = vunpack.c.h.b16 %v323
    %v1093 = vunpack.c.l.b16 %v324
    %v1094 = vunpack.c.h.b16 %v324
    %v1095 = vunpack.c.l.b16 %v325
    %v1096 = vunpack.c.h.b16 %v325
    %v1097 = vunpack.c.l.b16 %v326
    %v1098 = vunpack.c.h.b16 %v326
    %v1099 = vunpack.c.l.b16 %v327
    %v1100 = vunpack.c.h.b16 %v327
    %v1101 = vunpack.c.l.b16 %v328
    %v1102 = vunpack.c.h.b16 %v328
    %v1103 = vunpack.c.l.b16 %v329
    %v1104 = vunpack.c.h.b16 %v329
    %v1105 = vunpack.c.l.b16 %v330
    %v1106 = vunpack.c.h.b16 %v330
    %v1107 = vunpack.c.l.b16 %v331
    %v1108 = vunpack.c.h.b16 %v331
    %v1109 = vunpack.c.l.b16 %v332
    %v1110 = vunpack.c.h.b16 %v332
    %v1111 = vunpack.c.l.b16 %v333
    %v1112 = vunpack.c.h.b16 %v333
    %v1113 = vunpack.c.l.b16 %v334
    %v1114 = vunpack.c.h.b16 %v334
    %v1115 = vunpack.c.l.b16 %v335
    %v1116 = vunpack.c.h.b16 %v335
    %v1117 = vunpack.c.l.b16 %v336
    %v1118 = vunpack.c.h.b16 %v336
    %v1119 = vunpack.c.l.b16 %v337
    %v1120 = vunpack.c.h.b16 %v337
    %v1121 = vunpack.c.l.b16 %v338
    %v1122 = vunpack.c.h.b16 %v338
    %v1123 = vunpack.c.l.b16 %v339
    %v1124 = vunpack.c.h.b16 %v339
    %v1125 = vunpack.c.l.b16 %v340
    %v1126 = vunpack.c.h.b16 %v340
    %v1127 = vunpack.c.l.b16 %v341
    %v1128 = vunpack.c.h.b16 %v341
    %v1129 = vunpack.c.l.b16 %v342
    %v1130 = vunpack.c.h.b16 %v342
    %v1131 = vunpack.c.l.b16 %v343
    %v1132 = vunpack.c.h.b16 %v343
    %v1133 = vunpack.c.l.b16 %v344
    %v1134 = vunpack.c.h.b16 %v344
    %v1135 = vpack.c.b16 %v627, %v623
    %v1136 = vpack.c.b16 %v628, %v624
    %v1137 = vpack.c.b16 %v629, %v625
    %v1138 = vpack.c.b16 %v630, %v626
    %v1139 = vpack.c.b16 %v635, %v631
    %v1140 = vpack.c.b16 %v636, %v632
    %v1141 = vpack.c.b16 %v637, %v633
    %v1142 = vpack.c.b16 %v638, %v634
    %v1143 = vpack.c.b16 %v643, %v639
    %v1144 = vpack.c.b16 %v644, %v640
    %v1145 = vpack.c.b16 %v645, %v641
    %v1146 = vpack.c.b16 %v646, %v642
    %v1147 = vpack.c.b16 %v651, %v647
    %v1148 = vpack.c.b16 %v652, %v648
    %v1149 = vpack.c.b16 %v653, %v649
    %v1150 = vpack.c.b16 %v654, %v650
    %v1151 = vpack.c.b16 %v659, %v655
    %v1152 = vpack.c.b16 %v660, %v656
    %v1153 = vpack.c.b16 %v661, %v657
    %v1154 = vpack.c.b16 %v662, %v658
    %v1155 = vpack.c.b16 %v667, %v663
    %v1156 = vpack.c.b16 %v668, %v664
    %v1157 = vpack.c.b16 %v669, %v665
    %v1158 = vpack.c.b16 %v670, %v666
    %v1159 = vpack.c.b16 %v675, %v671
    %v1160 = vpack.c.b16 %v676, %v672
    %v1161 = vpack.c.b16 %v677, %v673
    %v1162 = vpack.c.b16 %v678, %v674
    %v1163 = vpack.c.b16 %v683, %v679
    %v1164 = vpack.c.b16 %v684, %v680
    %v1165 = vpack.c.b16 %v685, %v681
    %v1166 = vpack.c.b16 %v686, %v682
    %v1167 = vpack.c.b16 %v691, %v687
    %v1168 = vpack.c.b16 %v692, %v688
    %v1169 = vpack.c.b16 %v693, %v689
    %v1170 = vpack.c.b16 %v694, %v690
    %v1171 = vpack.c.b16 %v699, %v695
    %v1172 = vpack.c.b16 %v700, %v696
    %v1173 = vpack.c.b16 %v701, %v697
    %v1174 = vpack.c.b16 %v702, %v698
    %v1175 = vpack.c.b16 %v707, %v703
    %v1176 = vpack.c.b16 %v708, %v704
    %v1177 = vpack.c.b16 %v709, %v705
    %v1178 = vpack.c.b16 %v710, %v706
    %v1179 = vpack.c.b16 %v715, %v711
    %v1180 = vpack.c.b16 %v716, %v712
    %v1181 = vpack.c.b16 %v717, %v713
    %v1182 = vpack.c.b16 %v718, %v714
    %v1183 = vpack.c.b16 %v723, %v719
    %v1184 = vpack.c.b16 %v724, %v720
    %v1185 = vpack.c.b16 %v725, %v721
    %v1186 = vpack.c.b16 %v726, %v722
    %v1187 = vpack.c.b16 %v731, %v727
    %v1188 = vpack.c.b16 %v732, %v728
    %v1189 = vpack.c.b16 %v733, %v729
    %v1190 = vpack.c.b16 %v734, %v730
    %v1191 = vpack.c.b16 %v739, %v735
    %v1192 = vpack.c.b16 %v740, %v736
    %v1193 = vpack.c.b16 %v741, %v737
    %v1194 = vpack.c.b16 %v742, %v738
    %v1195 = vpack.c.b16 %v747, %v743
    %v1196 = vpack.c.b16 %v748, %v744
    %v1197 = vpack.c.b16 %v749, %v745
    %v1198 = vpack.c.b16 %v750, %v746
    %v1199 = vpack.c.b16 %v755, %v751
    %v1200 = vpack.c.b16 %v756, %v752
    %v1201 = vpack.c.b16 %v757, %v753
    %v1202 = vpack.c.b16 %v758, %v754
    %v1203 = vpack.c.b16 %v763, %v759
    %v1204 = vpack.c.b16 %v764, %v760
    %v1205 = vpack.c.b16 %v765, %v761
    %v1206 = vpack.c.b16 %v766, %v762
    %v1207 = vpack.c.b16 %v771, %v767
    %v1208 = vpack.c.b16 %v772, %v768
    %v1209 = vpack.c.b16 %v773, %v769
    %v1210 = vpack.c.b16 %v774, %v770
    %v1211 = vpack.c.b16 %v779, %v775
    %v1212 = vpack.c.b16 %v780, %v776
    %v1213 = vpack.c.b16 %v781, %v777
    %v1214 = vpack.c.b16 %v782, %v778
    %v1215 = vpack.c.b16 %v787, %v783
    %v1216 = vpack.c.b16 %v788, %v784
    %v1217 = vpack.c.b16 %v789, %v785
    %v1218 = vpack.c.b16 %v790, %v786
    %v1219 = vpack.c.b16 %v795, %v791
    %v1220 = vpack.c.b16 %v796, %v792
    %v1221 = vpack.c.b16 %v797, %v793
    %v1222 = vpack.c.b16 %v798, %v794
    %v1223 = vpack.c.b16 %v803, %v799
    %v1224 = vpack.c.b16 %v804, %v800
    %v1225 = vpack.c.b16 %v805, %v801
    %v1226 = vpack.c.b16 %v806, %v802
    %v1227 = vpack.c.b16 %v811, %v807
    %v1228 = vpack.c.b16 %v812, %v808
    %v1229 = vpack.c.b16 %v813, %v809
    %v1230 = vpack.c.b16 %v814, %v810
    %v1231 = vpack.c.b16 %v819, %v815
    %v1232 = vpack.c.b16 %v820, %v816
    %v1233 = vpack.c.b16 %v821, %v817
    %v1234 = vpack.c.b16 %v822, %v818
    %v1235 = vpack.c.b16 %v827, %v823
    %v1236 = vpack.c.b16 %v828, %v824
    %v1237 = vpack.c.b16 %v829, %v825
    %v1238 = vpack.c.b16 %v830, %v826
    %v1239 = vpack.c.b16 %v835, %v831
    %v1240 = vpack.c.b16 %v836, %v832
    %v1241 = vpack.c.b16 %v837, %v833
    %v1242 = vpack.c.b16 %v838, %v834
    %v1243 = vpack.c.b16 %v843, %v839
    %v1244 = vpack.c.b16 %v844, %v840
    %v1245 = vpack.c.b16 %v845, %v841
    %v1246 = vpack.c.b16 %v846, %v842
    %v1247 = vpack.c.b16 %v851, %v847
    %v1248 = vpack.c.b16 %v852, %v848
    %v1249 = vpack.c.b16 %v853, %v849
    %v1250 = vpack.c.b16 %v854, %v850
    %v1251 = vpack.c.b16 %v859, %v855
    %v1252 = vpack.c.b16 %v860, %v856
    %v1253 = vpack.c.b16 %v861, %v857
    %v1254 = vpack.c.b16 %v862, %v858
    %v1255 = vpack.c.b16 %v867, %v863
    %v1256 = vpack.c.b16 %v868, %v864
    %v1257 = vpack.c.b16 %v869, %v865
    %v1258 = vpack.c.b16 %v870, %v866
    %v1259 = vpack.c.b16 %v875, %v871
    %v1260 = vpack.c.b16 %v876, %v872
    %v1261 = vpack.c.b16 %v877, %v873
    %v1262 = vpack.c.b16 %v878, %v874
    %v1263 = vpack.c.b16 %v883, %v879
    %v1264 = vpack.c.b16 %v884, %v880
    %v1265 = vpack.c.b16 %v885, %v881
    %v1266 = vpack.c.b16 %v886, %v882
    %v1267 = vpack.c.b16 %v891, %v887
    %v1268 = vpack.c.b16 %v892, %v888
    %v1269 = vpack.c.b16 %v893, %v889
    %v1270 = vpack.c.b16 %v894, %v890
    %v1271 = vpack.c.b16 %v899, %v895
    %v1272 = vpack.c.b16 %v900, %v896
    %v1273 = vpack.c.b16 %v901, %v897
    %v1274 = vpack.c.b16 %v902, %v898
    %v1275 = vpack.c.b16 %v907, %v903
    %v1276 = vpack.c.b16 %v908, %v904
    %v1277 = vpack.c.b16 %v909, %v905
    %v1278 = vpack.c.b16 %v910, %v906
    %v1279 = vpack.c.b16 %v915, %v911
    %v1280 = vpack.c.b16 %v916, %v912
    %v1281 = vpack.c.b16 %v917, %v913
    %v1282 = vpack.c.b16 %v918, %v914
    %v1283 = vpack.c.b16 %v923, %v919
    %v1284 = vpack.c.b16 %v924, %v920
    %v1285 = vpack.c.b16 %v925, %v921
    %v1286 = vpack.c.b16 %v926, %v922
    %v1287 = vpack.c.b16 %v931, %v927
    %v1288 = vpack.c.b16 %v932, %v928
    %v1289 = vpack.c.b16 %v933, %v929
    %v1290 = vpack.c.b16 %v934, %v930
    %v1291 = vpack.c.b16 %v939, %v935
    %v1292 = vpack.c.b16 %v940, %v936
    %v1293 = vpack.c.b16 %v941, %v937
    %v1294 = vpack.c.b16 %v942, %v938
    %v1295 = vpack.c.b16 %v947, %v943
    %v1296 = vpack.c.b16 %v948, %v944
    %v1297 = vpack.c.b16 %v949, %v945
    %v1298 = vpack.c.b16 %v950, %v946
    %v1299 = vpack.c.b16 %v955, %v951
    %v1300 = vpack.c.b16 %v956, %v952
    %v1301 = vpack.c.b16 %v957, %v953
    %v1302 = vpack.c.b16 %v958, %v954
    %v1303 = vpack.c.b16 %v963, %v959
    %v1304 = vpack.c.b16 %v964, %v960
    %v1305 = vpack.c.b16 %v965, %v961
    %v1306 = vpack.c.b16 %v966, %v962
    %v1307 = vpack.c.b16 %v971, %v967
    %v1308 = vpack.c.b16 %v972, %v968
    %v1309 = vpack.c.b16 %v973, %v969
    %v1310 = vpack.c.b16 %v974, %v970
    %v1311 = vpack.c.b16 %v979, %v975
    %v1312 = vpack.c.b16 %v980, %v976
    %v1313 = vpack.c.b16 %v981, %v977
    %v1314 = vpack.c.b16 %v982, %v978
    %v1315 = vpack.c.b16 %v987, %v983
    %v1316 = vpack.c.b16 %v988, %v984
    %v1317 = vpack.c.b16 %v989, %v985
    %v1318 = vpack.c.b16 %v990, %v986
    %v1319 = vpack.c.b16 %v995, %v991
    %v1320 = vpack.c.b16 %v996, %v992
    %v1321 = vpack.c.b16 %v997, %v993
    %v1322 = vpack.c.b16 %v998, %v994
    %v1323 = vpack.c.b16 %v1003, %v999
    %v1324 = vpack.c.b16 %v1004, %v1000
    %v1325 = vpack.c.b16 %v1005, %v1001
    %v1326 = vpack.c.b16 %v1006, %v1002
    %v1327 = vpack.c.b16 %v1011, %v1007
    %v1328 = vpack.c.b16 %v1012, %v1008
    %v1329 = vpack.c.b16 %v1013, %v1009
    %v1330 = vpack.c.b16 %v1014, %v1010
    %v1331 = vpack.c.b16 %v1019, %v1015
    %v1332 = vpack.c.b16 %v1020, %v1016
    %v1333 = vpack.c.b16 %v1021, %v1017
    %v1334 = vpack.c.b16 %v1022, %v1018
    %v1335 = vpack.c.b16 %v1027, %v1023
    %v1336 = vpack.c.b16 %v1028, %v1024
    %v1337 = vpack.c.b16 %v1029, %v1025
    %v1338 = vpack.c.b16 %v1030, %v1026
    %v1339 = vpack.c.b16 %v1035, %v1031
    %v1340 = vpack.c.b16 %v1036, %v1032
    %v1341 = vpack.c.b16 %v1037, %v1033
    %v1342 = vpack.c.b16 %v1038, %v1034
    %v1343 = vpack.c.b16 %v1043, %v1039
    %v1344 = vpack.c.b16 %v1044, %v1040
    %v1345 = vpack.c.b16 %v1045, %v1041
    %v1346 = vpack.c.b16 %v1046, %v1042
    %v1347 = vpack.c.b16 %v1051, %v1047
    %v1348 = vpack.c.b16 %v1052, %v1048
    %v1349 = vpack.c.b16 %v1053, %v1049
    %v1350 = vpack.c.b16 %v1054, %v1050
    %v1351 = vpack.c.b16 %v1059, %v1055
    %v1352 = vpack.c.b16 %v1060, %v1056
    %v1353 = vpack.c.b16 %v1061, %v1057
    %v1354 = vpack.c.b16 %v1062, %v1058
    %v1355 = vpack.c.b16 %v1067, %v1063
    %v1356 = vpack.c.b16 %v1068, %v1064
    %v1357 = vpack.c.b16 %v1069, %v1065
    %v1358 = vpack.c.b16 %v1070, %v1066
    %v1359 = vpack.c.b16 %v1075, %v1071
    %v1360 = vpack.c.b16 %v1076, %v1072
    %v1361 = vpack.c.b16 %v1077, %v1073
    %v1362 = vpack.c.b16 %v1078, %v1074
    %v1363 = vpack.c.b16 %v1083, %v1079
    %v1364 = vpack.c.b16 %v1084, %v1080
    %v1365 = vpack.c.b16 %v1085, %v1081
    %v1366 = vpack.c.b16 %v1086, %v1082
    %v1367 = vpack.c.b16 %v1091, %v1087
    %v1368 = vpack.c.b16 %v1092, %v1088
    %v1369 = vpack.c.b16 %v1093, %v1089
    %v1370 = vpack.c.b16 %v1094, %v1090
    %v1371 = vpack.c.b16 %v1099, %v1095
    %v1372 = vpack.c.b16 %v1100, %v1096
    %v1373 = vpack.c.b16 %v1101, %v1097
    %v1374 = vpack.c.b16 %v1102, %v1098
    %v1375 = vpack.c.b16 %v1107, %v1103
    %v1376 = vpack.c.b16 %v1108, %v1104
    %v1377 = vpack.c.b16 %v1109, %v1105
    %v1378 = vpack.c.b16 %v1110, %v1106
    %v1379 = vpack.c.b16 %v1115, %v1111
    %v1380 = vpack.c.b16 %v1116, %v1112
    %v1381 = vpack.c.b16 %v1117, %v1113
    %v1382 = vpack.c.b16 %v1118, %v1114
    %v1383 = vpack.c.b16 %v1123, %v1119
    %v1384 = vpack.c.b16 %v1124, %v1120
    %v1385 = vpack.c.b16 %v1125, %v1121
    %v1386 = vpack.c.b16 %v1126, %v1122
    %v1387 = vpack.c.b16 %v1131, %v1127
    %v1388 = vpack.c.b16 %v1132, %v1128
    %v1389 = vpack.c.b16 %v1133, %v1129
    %v1390 = vpack.c.b16 %v1134, %v1130
    %1647 = vmatprep.subr.bf16.mxu0 %v1164
    %1648 = vmatpush1.bf16.msra.mxu0 %v1163
    %1649 = vmatprep.subr.bf16.mxu0 %v1160
    %1650 = vmatpush1.bf16.msra.mxu0 %v1159
    %1651 = vmatprep.subr.bf16.mxu0 %v1156
    %1652 = vmatpush1.bf16.msra.mxu0 %v1155
    %1653 = vmatprep.subr.bf16.mxu0 %v1152
    %1654 = vmatpush1.bf16.msra.mxu0 %v1151
    %1655 = vmatprep.subr.bf16.mxu0 %v1148
    %1656 = vmatpush1.bf16.msra.mxu0 %v1147
    %1657 = vmatprep.subr.bf16.mxu0 %v1144
    %1658 = vmatpush1.bf16.msra.mxu0 %v1143
    %1659 = vmatprep.subr.bf16.mxu0 %v1140
    %1660 = vmatpush1.bf16.msra.mxu0 %v1139
    %1661 = vmatprep.subr.bf16.mxu0 %v1136
    %1662 = vmatpush1.bf16.msra.mxu0 %v1135
    %1663 = vmatprep.subr.bf16.mxu0 %v1196
    %1664 = vmatpush2.bf16.msra.mxu0 %v1195
    %1665 = vmatprep.subr.bf16.mxu0 %v1192
    %1666 = vmatpush2.bf16.msra.mxu0 %v1191
    %1667 = vmatprep.subr.bf16.mxu0 %v1188
    %1668 = vmatpush2.bf16.msra.mxu0 %v1187
    %1669 = vmatprep.subr.bf16.mxu0 %v1184
    %1670 = vmatpush2.bf16.msra.mxu0 %v1183
    %1671 = vmatprep.subr.bf16.mxu0 %v1180
    %1672 = vmatpush2.bf16.msra.mxu0 %v1179
    %1673 = vmatprep.subr.bf16.mxu0 %v1176
    %1674 = vmatpush2.bf16.msra.mxu0 %v1175
    %1675 = vmatprep.subr.bf16.mxu0 %v1172
    %1676 = vmatpush2.bf16.msra.mxu0 %v1171
    %1677 = vmatprep.subr.bf16.mxu0 %v1168
    %1678 = vmatpush2.bf16.msra.mxu0 %v1167
    %1679 = vmatprep.mubr.bf16.mxu0 %v82
    %1680 = vmatmul.mubr.bf16.gmra.mxu0 %v81
    %v1681 = vpop.f32.mrf.mxu0
    %v1682 = vadd.f32 %v350, %v1681
    %v1683 = vpop.f32.mrf.mxu0
    %v1684 = vadd.f32 %v354, %v1683
    %v1685 = vpop.f32.mrf.mxu0
    %v1686 = vpop.f32.mrf.mxu0
    %1687 = vdwg.mxu0
    %1688 = vmatprep.subr.bf16.mxu0 %v1228
    %1689 = vmatpush1.bf16.msra.mxu0 %v1227
    %1690 = vmatprep.subr.bf16.mxu0 %v1224
    %1691 = vmatpush1.bf16.msra.mxu0 %v1223
    %1692 = vmatprep.subr.bf16.mxu0 %v1220
    %1693 = vmatpush1.bf16.msra.mxu0 %v1219
    %1694 = vmatprep.subr.bf16.mxu0 %v1216
    %1695 = vmatpush1.bf16.msra.mxu0 %v1215
    %1696 = vmatprep.subr.bf16.mxu0 %v1212
    %1697 = vmatpush1.bf16.msra.mxu0 %v1211
    %1698 = vmatprep.subr.bf16.mxu0 %v1208
    %1699 = vmatpush1.bf16.msra.mxu0 %v1207
    %1700 = vmatprep.subr.bf16.mxu0 %v1204
    %1701 = vmatpush1.bf16.msra.mxu0 %v1203
    %1702 = vmatprep.subr.bf16.mxu0 %v1200
    %1703 = vmatpush1.bf16.msra.mxu0 %v1199
    %1704 = vmatprep.subr.bf16.mxu0 %v1260
    %1705 = vmatpush2.bf16.msra.mxu0 %v1259
    %1706 = vmatprep.subr.bf16.mxu0 %v1256
    %1707 = vmatpush2.bf16.msra.mxu0 %v1255
    %1708 = vmatprep.subr.bf16.mxu0 %v1252
    %1709 = vmatpush2.bf16.msra.mxu0 %v1251
    %1710 = vmatprep.subr.bf16.mxu0 %v1248
    %1711 = vmatpush2.bf16.msra.mxu0 %v1247
    %1712 = vmatprep.subr.bf16.mxu0 %v1244
    %1713 = vmatpush2.bf16.msra.mxu0 %v1243
    %1714 = vmatprep.subr.bf16.mxu0 %v1240
    %1715 = vmatpush2.bf16.msra.mxu0 %v1239
    %1716 = vmatprep.subr.bf16.mxu0 %v1236
    %1717 = vmatpush2.bf16.msra.mxu0 %v1235
    %1718 = vmatprep.subr.bf16.mxu0 %v1232
    %1719 = vmatpush2.bf16.msra.mxu0 %v1231
    %1720 = vmatprep.mubr.bf16.mxu0 %v84
    %1721 = vmatmul.mubr.bf16.gmra.mxu0 %v83
    %v1722 = vpop.f32.mrf.mxu0
    %v1723 = vadd.f32 %v1682, %v1722
    %v1724 = vpop.f32.mrf.mxu0
    %v1725 = vadd.f32 %v1684, %v1724
    %v1726 = vpop.f32.mrf.mxu0
    %v1727 = vpop.f32.mrf.mxu0
    %1728 = vdwg.mxu0
    %1729 = vmatprep.subr.bf16.mxu0 %v1292
    %1730 = vmatpush1.bf16.msra.mxu0 %v1291
    %1731 = vmatprep.subr.bf16.mxu0 %v1288
    %1732 = vmatpush1.bf16.msra.mxu0 %v1287
    %1733 = vmatprep.subr.bf16.mxu0 %v1284
    %1734 = vmatpush1.bf16.msra.mxu0 %v1283
    %1735 = vmatprep.subr.bf16.mxu0 %v1280
    %1736 = vmatpush1.bf16.msra.mxu0 %v1279
    %1737 = vmatprep.subr.bf16.mxu0 %v1276
    %1738 = vmatpush1.bf16.msra.mxu0 %v1275
    %1739 = vmatprep.subr.bf16.mxu0 %v1272
    %1740 = vmatpush1.bf16.msra.mxu0 %v1271
    %1741 = vmatprep.subr.bf16.mxu0 %v1268
    %1742 = vmatpush1.bf16.msra.mxu0 %v1267
    %1743 = vmatprep.subr.bf16.mxu0 %v1264
    %1744 = vmatpush1.bf16.msra.mxu0 %v1263
    %1745 = vmatprep.subr.bf16.mxu0 %v1324
    %1746 = vmatpush2.bf16.msra.mxu0 %v1323
    %1747 = vmatprep.subr.bf16.mxu0 %v1320
    %1748 = vmatpush2.bf16.msra.mxu0 %v1319
    %1749 = vmatprep.subr.bf16.mxu0 %v1316
    %1750 = vmatpush2.bf16.msra.mxu0 %v1315
    %1751 = vmatprep.subr.bf16.mxu0 %v1312
    %1752 = vmatpush2.bf16.msra.mxu0 %v1311
    %1753 = vmatprep.subr.bf16.mxu0 %v1308
    %1754 = vmatpush2.bf16.msra.mxu0 %v1307
    %1755 = vmatprep.subr.bf16.mxu0 %v1304
    %1756 = vmatpush2.bf16.msra.mxu0 %v1303
    %1757 = vmatprep.subr.bf16.mxu0 %v1300
    %1758 = vmatpush2.bf16.msra.mxu0 %v1299
    %1759 = vmatprep.subr.bf16.mxu0 %v1296
    %1760 = vmatpush2.bf16.msra.mxu0 %v1295
    %1761 = vmatprep.mubr.bf16.mxu0 %v86
    %1762 = vmatmul.mubr.bf16.gmra.mxu0 %v85
    %v1763 = vpop.f32.mrf.mxu0
    %v1764 = vadd.f32 %v1723, %v1763
    %v1765 = vpop.f32.mrf.mxu0
    %v1766 = vadd.f32 %v1725, %v1765
    %v1767 = vpop.f32.mrf.mxu0
    %v1768 = vpop.f32.mrf.mxu0
    %1769 = vdwg.mxu0
    %1770 = vmatprep.subr.bf16.mxu0 %v1356
    %1771 = vmatpush1.bf16.msra.mxu0 %v1355
    %1772 = vmatprep.subr.bf16.mxu0 %v1352
    %1773 = vmatpush1.bf16.msra.mxu0 %v1351
    %1774 = vmatprep.subr.bf16.mxu0 %v1348
    %1775 = vmatpush1.bf16.msra.mxu0 %v1347
    %1776 = vmatprep.subr.bf16.mxu0 %v1344
    %1777 = vmatpush1.bf16.msra.mxu0 %v1343
    %1778 = vmatprep.subr.bf16.mxu0 %v1340
    %1779 = vmatpush1.bf16.msra.mxu0 %v1339
    %1780 = vmatprep.subr.bf16.mxu0 %v1336
    %1781 = vmatpush1.bf16.msra.mxu0 %v1335
    %1782 = vmatprep.subr.bf16.mxu0 %v1332
    %1783 = vmatpush1.bf16.msra.mxu0 %v1331
    %1784 = vmatprep.subr.bf16.mxu0 %v1328
    %1785 = vmatpush1.bf16.msra.mxu0 %v1327
    %1786 = vmatprep.subr.bf16.mxu0 %v1388
    %1787 = vmatpush2.bf16.msra.mxu0 %v1387
    %1788 = vmatprep.subr.bf16.mxu0 %v1384
    %1789 = vmatpush2.bf16.msra.mxu0 %v1383
    %1790 = vmatprep.subr.bf16.mxu0 %v1380
    %1791 = vmatpush2.bf16.msra.mxu0 %v1379
    %1792 = vmatprep.subr.bf16.mxu0 %v1376
    %1793 = vmatpush2.bf16.msra.mxu0 %v1375
    %1794 = vmatprep.subr.bf16.mxu0 %v1372
    %1795 = vmatpush2.bf16.msra.mxu0 %v1371
    %1796 = vmatprep.subr.bf16.mxu0 %v1368
    %1797 = vmatpush2.bf16.msra.mxu0 %v1367
    %1798 = vmatprep.subr.bf16.mxu0 %v1364
    %1799 = vmatpush2.bf16.msra.mxu0 %v1363
    %1800 = vmatprep.subr.bf16.mxu0 %v1360
    %1801 = vmatpush2.bf16.msra.mxu0 %v1359
    %1802 = vmatprep.mubr.bf16.mxu0 %v88
    %1803 = vmatmul.mubr.bf16.gmra.mxu0 %v87
    %v1804 = vpop.f32.mrf.mxu0
    %v1805 = vadd.f32 %v1764, %v1804
    %v1806 = vpop.f32.mrf.mxu0
    %v1807 = vadd.f32 %v1766, %v1806
    %v1808 = vpop.f32.mrf.mxu0
    %v1809 = vpop.f32.mrf.mxu0
    %1810 = vdwg.mxu0
    %1811 = vmatprep.subr.bf16.mxu0 %v1166
    %1812 = vmatpush1.bf16.msra.mxu0 %v1165
    %1813 = vmatprep.subr.bf16.mxu0 %v1162
    %1814 = vmatpush1.bf16.msra.mxu0 %v1161
    %1815 = vmatprep.subr.bf16.mxu0 %v1158
    %1816 = vmatpush1.bf16.msra.mxu0 %v1157
    %1817 = vmatprep.subr.bf16.mxu0 %v1154
    %1818 = vmatpush1.bf16.msra.mxu0 %v1153
    %1819 = vmatprep.subr.bf16.mxu0 %v1150
    %1820 = vmatpush1.bf16.msra.mxu0 %v1149
    %1821 = vmatprep.subr.bf16.mxu0 %v1146
    %1822 = vmatpush1.bf16.msra.mxu0 %v1145
    %1823 = vmatprep.subr.bf16.mxu0 %v1142
    %1824 = vmatpush1.bf16.msra.mxu0 %v1141
    %1825 = vmatprep.subr.bf16.mxu0 %v1138
    %1826 = vmatpush1.bf16.msra.mxu0 %v1137
    %1827 = vmatprep.subr.bf16.mxu0 %v1198
    %1828 = vmatpush2.bf16.msra.mxu0 %v1197
    %1829 = vmatprep.subr.bf16.mxu0 %v1194
    %1830 = vmatpush2.bf16.msra.mxu0 %v1193
    %1831 = vmatprep.subr.bf16.mxu0 %v1190
    %1832 = vmatpush2.bf16.msra.mxu0 %v1189
    %1833 = vmatprep.subr.bf16.mxu0 %v1186
    %1834 = vmatpush2.bf16.msra.mxu0 %v1185
    %1835 = vmatprep.subr.bf16.mxu0 %v1182
    %1836 = vmatpush2.bf16.msra.mxu0 %v1181
    %1837 = vmatprep.subr.bf16.mxu0 %v1178
    %1838 = vmatpush2.bf16.msra.mxu0 %v1177
    %1839 = vmatprep.subr.bf16.mxu0 %v1174
    %1840 = vmatpush2.bf16.msra.mxu0 %v1173
    %1841 = vmatprep.subr.bf16.mxu0 %v1170
    %1842 = vmatpush2.bf16.msra.mxu0 %v1169
    %1843 = vmatprep.mubr.bf16.mxu0 %v82
    %1844 = vmatmul.mubr.bf16.gmra.mxu0 %v81
    %v1845 = vpop.f32.mrf.mxu0
    %v1846 = vadd.f32 %v358, %v1845
    %v1847 = vpop.f32.mrf.mxu0
    %v1848 = vadd.f32 %v362, %v1847
    %v1849 = vpop.f32.mrf.mxu0
    %v1850 = vpop.f32.mrf.mxu0
    %1851 = vdwg.mxu0
    %1852 = vmatprep.subr.bf16.mxu0 %v1230
    %1853 = vmatpush1.bf16.msra.mxu0 %v1229
    %1854 = vmatprep.subr.bf16.mxu0 %v1226
    %1855 = vmatpush1.bf16.msra.mxu0 %v1225
    %1856 = vmatprep.subr.bf16.mxu0 %v1222
    %1857 = vmatpush1.bf16.msra.mxu0 %v1221
    %1858 = vmatprep.subr.bf16.mxu0 %v1218
    %1859 = vmatpush1.bf16.msra.mxu0 %v1217
    %1860 = vmatprep.subr.bf16.mxu0 %v1214
    %1861 = vmatpush1.bf16.msra.mxu0 %v1213
    %1862 = vmatprep.subr.bf16.mxu0 %v1210
    %1863 = vmatpush1.bf16.msra.mxu0 %v1209
    %1864 = vmatprep.subr.bf16.mxu0 %v1206
    %1865 = vmatpush1.bf16.msra.mxu0 %v1205
    %1866 = vmatprep.subr.bf16.mxu0 %v1202
    %1867 = vmatpush1.bf16.msra.mxu0 %v1201
    %1868 = vmatprep.subr.bf16.mxu0 %v1262
    %1869 = vmatpush2.bf16.msra.mxu0 %v1261
    %1870 = vmatprep.subr.bf16.mxu0 %v1258
    %1871 = vmatpush2.bf16.msra.mxu0 %v1257
    %1872 = vmatprep.subr.bf16.mxu0 %v1254
    %1873 = vmatpush2.bf16.msra.mxu0 %v1253
    %1874 = vmatprep.subr.bf16.mxu0 %v1250
    %1875 = vmatpush2.bf16.msra.mxu0 %v1249
    %1876 = vmatprep.subr.bf16.mxu0 %v1246
    %1877 = vmatpush2.bf16.msra.mxu0 %v1245
    %1878 = vmatprep.subr.bf16.mxu0 %v1242
    %1879 = vmatpush2.bf16.msra.mxu0 %v1241
    %1880 = vmatprep.subr.bf16.mxu0 %v1238
    %1881 = vmatpush2.bf16.msra.mxu0 %v1237
    %1882 = vmatprep.subr.bf16.mxu0 %v1234
    %1883 = vmatpush2.bf16.msra.mxu0 %v1233
    %1884 = vmatprep.mubr.bf16.mxu0 %v84
    %1885 = vmatmul.mubr.bf16.gmra.mxu0 %v83
    %v1886 = vpop.f32.mrf.mxu0
    %v1887 = vadd.f32 %v1846, %v1886
    %v1888 = vpop.f32.mrf.mxu0
    %v1889 = vadd.f32 %v1848, %v1888
    %v1890 = vpop.f32.mrf.mxu0
    %v1891 = vpop.f32.mrf.mxu0
    %1892 = vdwg.mxu0
    %1893 = vmatprep.subr.bf16.mxu0 %v1294
    %1894 = vmatpush1.bf16.msra.mxu0 %v1293
    %1895 = vmatprep.subr.bf16.mxu0 %v1290
    %1896 = vmatpush1.bf16.msra.mxu0 %v1289
    %1897 = vmatprep.subr.bf16.mxu0 %v1286
    %1898 = vmatpush1.bf16.msra.mxu0 %v1285
    %1899 = vmatprep.subr.bf16.mxu0 %v1282
    %1900 = vmatpush1.bf16.msra.mxu0 %v1281
    %1901 = vmatprep.subr.bf16.mxu0 %v1278
    %1902 = vmatpush1.bf16.msra.mxu0 %v1277
    %1903 = vmatprep.subr.bf16.mxu0 %v1274
    %1904 = vmatpush1.bf16.msra.mxu0 %v1273
    %1905 = vmatprep.subr.bf16.mxu0 %v1270
    %1906 = vmatpush1.bf16.msra.mxu0 %v1269
    %1907 = vmatprep.subr.bf16.mxu0 %v1266
    %1908 = vmatpush1.bf16.msra.mxu0 %v1265
    %1909 = vmatprep.subr.bf16.mxu0 %v1326
    %1910 = vmatpush2.bf16.msra.mxu0 %v1325
    %1911 = vmatprep.subr.bf16.mxu0 %v1322
    %1912 = vmatpush2.bf16.msra.mxu0 %v1321
    %1913 = vmatprep.subr.bf16.mxu0 %v1318
    %1914 = vmatpush2.bf16.msra.mxu0 %v1317
    %1915 = vmatprep.subr.bf16.mxu0 %v1314
    %1916 = vmatpush2.bf16.msra.mxu0 %v1313
    %1917 = vmatprep.subr.bf16.mxu0 %v1310
    %1918 = vmatpush2.bf16.msra.mxu0 %v1309
    %1919 = vmatprep.subr.bf16.mxu0 %v1306
    %1920 = vmatpush2.bf16.msra.mxu0 %v1305
    %1921 = vmatprep.subr.bf16.mxu0 %v1302
    %1922 = vmatpush2.bf16.msra.mxu0 %v1301
    %1923 = vmatprep.subr.bf16.mxu0 %v1298
    %1924 = vmatpush2.bf16.msra.mxu0 %v1297
    %1925 = vmatprep.mubr.bf16.mxu0 %v86
    %1926 = vmatmul.mubr.bf16.gmra.mxu0 %v85
    %v1927 = vpop.f32.mrf.mxu0
    %v1928 = vadd.f32 %v1887, %v1927
    %v1929 = vpop.f32.mrf.mxu0
    %v1930 = vadd.f32 %v1889, %v1929
    %v1931 = vpop.f32.mrf.mxu0
    %v1932 = vpop.f32.mrf.mxu0
    %1933 = vdwg.mxu0
    %1934 = vmatprep.subr.bf16.mxu0 %v1358
    %1935 = vmatpush1.bf16.msra.mxu0 %v1357
    %1936 = vmatprep.subr.bf16.mxu0 %v1354
    %1937 = vmatpush1.bf16.msra.mxu0 %v1353
    %1938 = vmatprep.subr.bf16.mxu0 %v1350
    %1939 = vmatpush1.bf16.msra.mxu0 %v1349
    %1940 = vmatprep.subr.bf16.mxu0 %v1346
    %1941 = vmatpush1.bf16.msra.mxu0 %v1345
    %1942 = vmatprep.subr.bf16.mxu0 %v1342
    %1943 = vmatpush1.bf16.msra.mxu0 %v1341
    %1944 = vmatprep.subr.bf16.mxu0 %v1338
    %1945 = vmatpush1.bf16.msra.mxu0 %v1337
    %1946 = vmatprep.subr.bf16.mxu0 %v1334
    %1947 = vmatpush1.bf16.msra.mxu0 %v1333
    %1948 = vmatprep.subr.bf16.mxu0 %v1330
    %1949 = vmatpush1.bf16.msra.mxu0 %v1329
    %1950 = vmatprep.subr.bf16.mxu0 %v1390
    %1951 = vmatpush2.bf16.msra.mxu0 %v1389
    %1952 = vmatprep.subr.bf16.mxu0 %v1386
    %1953 = vmatpush2.bf16.msra.mxu0 %v1385
    %1954 = vmatprep.subr.bf16.mxu0 %v1382
    %1955 = vmatpush2.bf16.msra.mxu0 %v1381
    %1956 = vmatprep.subr.bf16.mxu0 %v1378
    %1957 = vmatpush2.bf16.msra.mxu0 %v1377
    %1958 = vmatprep.subr.bf16.mxu0 %v1374
    %1959 = vmatpush2.bf16.msra.mxu0 %v1373
    %1960 = vmatprep.subr.bf16.mxu0 %v1370
    %1961 = vmatpush2.bf16.msra.mxu0 %v1369
    %1962 = vmatprep.subr.bf16.mxu0 %v1366
    %1963 = vmatpush2.bf16.msra.mxu0 %v1365
    %1964 = vmatprep.subr.bf16.mxu0 %v1362
    %1965 = vmatpush2.bf16.msra.mxu0 %v1361
    %1966 = vmatprep.mubr.bf16.mxu0 %v88
    %1967 = vmatmul.mubr.bf16.gmra.mxu0 %v87
    %v1968 = vpop.f32.mrf.mxu0
    %v1969 = vadd.f32 %v1928, %v1968
    %v1970 = vpop.f32.mrf.mxu0
    %v1971 = vadd.f32 %v1930, %v1970
    %v1972 = vpop.f32.mrf.mxu0
    %v1973 = vpop.f32.mrf.mxu0
    %1974 = vdwg.mxu0
    %v1975 = vmax.f32 %v1805, 0.0
    %v1976 = vmax.f32 %v1807, 0.0
    %v1977 = vmax.f32 %v1969, 0.0
    %v1978 = vmax.f32 %v1971, 0.0
    %v1979 = vpack.c.bf16 %v1975, %v1975
    %v1980 = vpack.c.bf16 %v1976, %v1976
    %v1981 = vpack.c.bf16 %v1977, %v1977
    %v1982 = vpack.c.bf16 %v1978, %v1978
    %v1983 = vld [vmem:[#allocation8] sm:$0xf]
    %v1984 = vld [vmem:[#allocation8 + $0x4] sm:$0xf]
    %v1985 = vld [vmem:[#allocation8 + $0x8] sm:$0xf]
    %v1986 = vld [vmem:[#allocation8 + $0xc] sm:$0xf]
    %v1987 = vld [vmem:[#allocation8 + $0x10] sm:$0xf]
    %v1988 = vld [vmem:[#allocation8 + $0x14] sm:$0xf]
    %v1989 = vld [vmem:[#allocation8 + $0x18] sm:$0xf]
    %v1990 = vld [vmem:[#allocation8 + $0x1c] sm:$0xf]
    %v1991 = vld [vmem:[#allocation8 + $0x20] sm:$0xf]
    %v1992 = vld [vmem:[#allocation8 + $0x24] sm:$0xf]
    %v1993 = vld [vmem:[#allocation8 + $0x28] sm:$0xf]
    %v1994 = vld [vmem:[#allocation8 + $0x2c] sm:$0xf]
    %v1995 = vld [vmem:[#allocation8 + $0x30] sm:$0xf]
    %v1996 = vld [vmem:[#allocation8 + $0x34] sm:$0xf]
    %v1997 = vld [vmem:[#allocation8 + $0x38] sm:$0xf]
    %v1998 = vld [vmem:[#allocation8 + $0x3c] sm:$0xf]
    %v1999 = vld [vmem:[#allocation8 + $0x40] sm:$0xf]
    %v2000 = vld [vmem:[#allocation8 + $0x44] sm:$0xf]
    %v2001 = vld [vmem:[#allocation8 + $0x48] sm:$0xf]
    %v2002 = vld [vmem:[#allocation8 + $0x4c] sm:$0xf]
    %v2003 = vld [vmem:[#allocation8 + $0x50] sm:$0xf]
    %v2004 = vld [vmem:[#allocation8 + $0x54] sm:$0xf]
    %v2005 = vld [vmem:[#allocation8 + $0x58] sm:$0xf]
    %v2006 = vld [vmem:[#allocation8 + $0x5c] sm:$0xf]
    %v2007 = vld [vmem:[#allocation8 + $0x60] sm:$0xf]
    %v2008 = vld [vmem:[#allocation8 + $0x64] sm:$0xf]
    %v2009 = vld [vmem:[#allocation8 + $0x68] sm:$0xf]
    %v2010 = vld [vmem:[#allocation8 + $0x6c] sm:$0xf]
    %v2011 = vld [vmem:[#allocation8 + $0x70] sm:$0xf]
    %v2012 = vld [vmem:[#allocation8 + $0x74] sm:$0xf]
    %v2013 = vld [vmem:[#allocation8 + $0x78] sm:$0xf]
    %v2014 = vld [vmem:[#allocation8 + $0x7c] sm:$0xf]
    %v2015 = vld [vmem:[#allocation8 + $0x80] sm:$0xf]
    %v2016 = vld [vmem:[#allocation8 + $0x84] sm:$0xf]
    %v2017 = vld [vmem:[#allocation8 + $0x88] sm:$0xf]
    %v2018 = vld [vmem:[#allocation8 + $0x8c] sm:$0xf]
    %v2019 = vld [vmem:[#allocation8 + $0x90] sm:$0xf]
    %v2020 = vld [vmem:[#allocation8 + $0x94] sm:$0xf]
    %v2021 = vld [vmem:[#allocation8 + $0x98] sm:$0xf]
    %v2022 = vld [vmem:[#allocation8 + $0x9c] sm:$0xf]
    %v2023 = vld [vmem:[#allocation8 + $0xa0] sm:$0xf]
    %v2024 = vld [vmem:[#allocation8 + $0xa4] sm:$0xf]
    %v2025 = vld [vmem:[#allocation8 + $0xa8] sm:$0xf]
    %v2026 = vld [vmem:[#allocation8 + $0xac] sm:$0xf]
    %v2027 = vld [vmem:[#allocation8 + $0xb0] sm:$0xf]
    %v2028 = vld [vmem:[#allocation8 + $0xb4] sm:$0xf]
    %v2029 = vld [vmem:[#allocation8 + $0xb8] sm:$0xf]
    %v2030 = vld [vmem:[#allocation8 + $0xbc] sm:$0xf]
    %v2031 = vld [vmem:[#allocation8 + $0xc0] sm:$0xf]
    %v2032 = vld [vmem:[#allocation8 + $0xc4] sm:$0xf]
    %v2033 = vld [vmem:[#allocation8 + $0xc8] sm:$0xf]
    %v2034 = vld [vmem:[#allocation8 + $0xcc] sm:$0xf]
    %v2035 = vld [vmem:[#allocation8 + $0xd0] sm:$0xf]
    %v2036 = vld [vmem:[#allocation8 + $0xd4] sm:$0xf]
    %v2037 = vld [vmem:[#allocation8 + $0xd8] sm:$0xf]
    %v2038 = vld [vmem:[#allocation8 + $0xdc] sm:$0xf]
    %v2039 = vld [vmem:[#allocation8 + $0xe0] sm:$0xf]
    %v2040 = vld [vmem:[#allocation8 + $0xe4] sm:$0xf]
    %v2041 = vld [vmem:[#allocation8 + $0xe8] sm:$0xf]
    %v2042 = vld [vmem:[#allocation8 + $0xec] sm:$0xf]
    %v2043 = vld [vmem:[#allocation8 + $0xf0] sm:$0xf]
    %v2044 = vld [vmem:[#allocation8 + $0xf4] sm:$0xf]
    %v2045 = vld [vmem:[#allocation8 + $0xf8] sm:$0xf]
    %v2046 = vld [vmem:[#allocation8 + $0xfc] sm:$0xf]
    %v2047 = vld [vmem:[%s4] sm:$0x1]
    %v2049 = vlaneseq
    %v2050 = vshrl.u32 %v2049, 7
    %v2051 = vsub.s32 0, %v2050
    %v2052 = vrot.slane %v2047, %v2051
    %v2118 = vunpack.c.l.b16 %v1983
    %v2119 = vunpack.c.l.b16 %v1984
    %v2120 = vunpack.c.l.b16 %v1985
    %v2121 = vunpack.c.l.b16 %v1986
    %v2122 = vunpack.c.l.b16 %v1987
    %v2123 = vunpack.c.l.b16 %v1988
    %v2124 = vunpack.c.l.b16 %v1989
    %v2125 = vunpack.c.l.b16 %v1990
    %v2126 = vunpack.c.l.b16 %v1991
    %v2127 = vunpack.c.l.b16 %v1992
    %v2128 = vunpack.c.l.b16 %v1993
    %v2129 = vunpack.c.l.b16 %v1994
    %v2130 = vunpack.c.l.b16 %v1995
    %v2131 = vunpack.c.l.b16 %v1996
    %v2132 = vunpack.c.l.b16 %v1997
    %v2133 = vunpack.c.l.b16 %v1998
    %v2134 = vunpack.c.l.b16 %v1999
    %v2135 = vunpack.c.l.b16 %v2000
    %v2136 = vunpack.c.l.b16 %v2001
    %v2137 = vunpack.c.l.b16 %v2002
    %v2138 = vunpack.c.l.b16 %v2003
    %v2139 = vunpack.c.l.b16 %v2004
    %v2140 = vunpack.c.l.b16 %v2005
    %v2141 = vunpack.c.l.b16 %v2006
    %v2142 = vunpack.c.l.b16 %v2007
    %v2143 = vunpack.c.l.b16 %v2008
    %v2144 = vunpack.c.l.b16 %v2009
    %v2145 = vunpack.c.l.b16 %v2010
    %v2146 = vunpack.c.l.b16 %v2011
    %v2147 = vunpack.c.l.b16 %v2012
    %v2148 = vunpack.c.l.b16 %v2013
    %v2149 = vunpack.c.l.b16 %v2014
    %v2150 = vunpack.c.l.b16 %v2015
    %v2151 = vunpack.c.l.b16 %v2016
    %v2152 = vunpack.c.l.b16 %v2017
    %v2153 = vunpack.c.l.b16 %v2018
    %v2154 = vunpack.c.l.b16 %v2019
    %v2155 = vunpack.c.l.b16 %v2020
    %v2156 = vunpack.c.l.b16 %v2021
    %v2157 = vunpack.c.l.b16 %v2022
    %v2158 = vunpack.c.l.b16 %v2023
    %v2159 = vunpack.c.l.b16 %v2024
    %v2160 = vunpack.c.l.b16 %v2025
    %v2161 = vunpack.c.l.b16 %v2026
    %v2162 = vunpack.c.l.b16 %v2027
    %v2163 = vunpack.c.l.b16 %v2028
    %v2164 = vunpack.c.l.b16 %v2029
    %v2165 = vunpack.c.l.b16 %v2030
    %v2166 = vunpack.c.l.b16 %v2031
    %v2167 = vunpack.c.l.b16 %v2032
    %v2168 = vunpack.c.l.b16 %v2033
    %v2169 = vunpack.c.l.b16 %v2034
    %v2170 = vunpack.c.l.b16 %v2035
    %v2171 = vunpack.c.l.b16 %v2036
    %v2172 = vunpack.c.l.b16 %v2037
    %v2173 = vunpack.c.l.b16 %v2038
    %v2174 = vunpack.c.l.b16 %v2039
    %v2175 = vunpack.c.l.b16 %v2040
    %v2176 = vunpack.c.l.b16 %v2041
    %v2177 = vunpack.c.l.b16 %v2042
    %v2178 = vunpack.c.l.b16 %v2043
    %v2179 = vunpack.c.l.b16 %v2044
    %v2180 = vunpack.c.l.b16 %v2045
    %v2181 = vunpack.c.l.b16 %v2046
    %v2182 = vpack.c.b16 %v2119, %v2118
    %v2183 = vpack.c.b16 %v2121, %v2120
    %v2184 = vpack.c.b16 %v2123, %v2122
    %v2185 = vpack.c.b16 %v2125, %v2124
    %v2186 = vpack.c.b16 %v2127, %v2126
    %v2187 = vpack.c.b16 %v2129, %v2128
    %v2188 = vpack.c.b16 %v2131, %v2130
    %v2189 = vpack.c.b16 %v2133, %v2132
    %v2190 = vpack.c.b16 %v2135, %v2134
    %v2191 = vpack.c.b16 %v2137, %v2136
    %v2192 = vpack.c.b16 %v2139, %v2138
    %v2193 = vpack.c.b16 %v2141, %v2140
    %v2194 = vpack.c.b16 %v2143, %v2142
    %v2195 = vpack.c.b16 %v2145, %v2144
    %v2196 = vpack.c.b16 %v2147, %v2146
    %v2197 = vpack.c.b16 %v2149, %v2148
    %v2198 = vpack.c.b16 %v2151, %v2150
    %v2199 = vpack.c.b16 %v2153, %v2152
    %v2200 = vpack.c.b16 %v2155, %v2154
    %v2201 = vpack.c.b16 %v2157, %v2156
    %v2202 = vpack.c.b16 %v2159, %v2158
    %v2203 = vpack.c.b16 %v2161, %v2160
    %v2204 = vpack.c.b16 %v2163, %v2162
    %v2205 = vpack.c.b16 %v2165, %v2164
    %v2206 = vpack.c.b16 %v2167, %v2166
    %v2207 = vpack.c.b16 %v2169, %v2168
    %v2208 = vpack.c.b16 %v2171, %v2170
    %v2209 = vpack.c.b16 %v2173, %v2172
    %v2210 = vpack.c.b16 %v2175, %v2174
    %v2211 = vpack.c.b16 %v2177, %v2176
    %v2212 = vpack.c.b16 %v2179, %v2178
    %v2213 = vpack.c.b16 %v2181, %v2180
    %2246 = vmatprep.subr.bf16.mxu0 0
    %2247 = vmatpush1.bf16.msra.mxu0 %v2189
    %2248 = vmatprep.subr.bf16.mxu0 0
    %2249 = vmatpush1.bf16.msra.mxu0 %v2188
    %2250 = vmatprep.subr.bf16.mxu0 0
    %2251 = vmatpush1.bf16.msra.mxu0 %v2187
    %2252 = vmatprep.subr.bf16.mxu0 0
    %2253 = vmatpush1.bf16.msra.mxu0 %v2186
    %2254 = vmatprep.subr.bf16.mxu0 0
    %2255 = vmatpush1.bf16.msra.mxu0 %v2185
    %2256 = vmatprep.subr.bf16.mxu0 0
    %2257 = vmatpush1.bf16.msra.mxu0 %v2184
    %2258 = vmatprep.subr.bf16.mxu0 0
    %2259 = vmatpush1.bf16.msra.mxu0 %v2183
    %2260 = vmatprep.subr.bf16.mxu0 0
    %2261 = vmatpush1.bf16.msra.mxu0 %v2182
    %2262 = vmatprep.subr.bf16.mxu0 0
    %2263 = vmatpush2.bf16.msra.mxu0 %v2197
    %2264 = vmatprep.subr.bf16.mxu0 0
    %2265 = vmatpush2.bf16.msra.mxu0 %v2196
    %2266 = vmatprep.subr.bf16.mxu0 0
    %2267 = vmatpush2.bf16.msra.mxu0 %v2195
    %2268 = vmatprep.subr.bf16.mxu0 0
    %2269 = vmatpush2.bf16.msra.mxu0 %v2194
    %2270 = vmatprep.subr.bf16.mxu0 0
    %2271 = vmatpush2.bf16.msra.mxu0 %v2193
    %2272 = vmatprep.subr.bf16.mxu0 0
    %2273 = vmatpush2.bf16.msra.mxu0 %v2192
    %2274 = vmatprep.subr.bf16.mxu0 0
    %2275 = vmatpush2.bf16.msra.mxu0 %v2191
    %2276 = vmatprep.subr.bf16.mxu0 0
    %2277 = vmatpush2.bf16.msra.mxu0 %v2190
    %2278 = vmatprep.mubr.bf16.mxu0 %v1980
    %2279 = vmatmul.mubr.bf16.gmra.mxu0 %v1979
    %v2280 = vpop.f32.mrf.mxu0
    %v2281 = vadd.f32 %v2052, %v2280
    %v2282 = vpop.f32.mrf.mxu0
    %v2283 = vpop.f32.mrf.mxu0
    %v2284 = vpop.f32.mrf.mxu0
    %2285 = vdwg.mxu0
    %2286 = vmatprep.subr.bf16.mxu0 0
    %2287 = vmatpush1.bf16.msra.mxu0 %v2205
    %2288 = vmatprep.subr.bf16.mxu0 0
    %2289 = vmatpush1.bf16.msra.mxu0 %v2204
    %2290 = vmatprep.subr.bf16.mxu0 0
    %2291 = vmatpush1.bf16.msra.mxu0 %v2203
    %2292 = vmatprep.subr.bf16.mxu0 0
    %2293 = vmatpush1.bf16.msra.mxu0 %v2202
    %2294 = vmatprep.subr.bf16.mxu0 0
    %2295 = vmatpush1.bf16.msra.mxu0 %v2201
    %2296 = vmatprep.subr.bf16.mxu0 0
    %2297 = vmatpush1.bf16.msra.mxu0 %v2200
    %2298 = vmatprep.subr.bf16.mxu0 0
    %2299 = vmatpush1.bf16.msra.mxu0 %v2199
    %2300 = vmatprep.subr.bf16.mxu0 0
    %2301 = vmatpush1.bf16.msra.mxu0 %v2198
    %2302 = vmatprep.subr.bf16.mxu0 0
    %2303 = vmatpush2.bf16.msra.mxu0 %v2213
    %2304 = vmatprep.subr.bf16.mxu0 0
    %2305 = vmatpush2.bf16.msra.mxu0 %v2212
    %2306 = vmatprep.subr.bf16.mxu0 0
    %2307 = vmatpush2.bf16.msra.mxu0 %v2211
    %2308 = vmatprep.subr.bf16.mxu0 0
    %2309 = vmatpush2.bf16.msra.mxu0 %v2210
    %2310 = vmatprep.subr.bf16.mxu0 0
    %2311 = vmatpush2.bf16.msra.mxu0 %v2209
    %2312 = vmatprep.subr.bf16.mxu0 0
    %2313 = vmatpush2.bf16.msra.mxu0 %v2208
    %2314 = vmatprep.subr.bf16.mxu0 0
    %2315 = vmatpush2.bf16.msra.mxu0 %v2207
    %2316 = vmatprep.subr.bf16.mxu0 0
    %2317 = vmatpush2.bf16.msra.mxu0 %v2206
    %2318 = vmatprep.mubr.bf16.mxu0 %v1982
    %2319 = vmatmul.mubr.bf16.gmra.mxu0 %v1981
    %v2320 = vpop.f32.mrf.mxu0
    %v2321 = vadd.f32 %v2281, %v2320
    %v2322 = vpop.f32.mrf.mxu0
    %v2323 = vpop.f32.mrf.mxu0
    %v2324 = vpop.f32.mrf.mxu0
    %2325 = vdwg.mxu0
    %2326 = vst [vmem:[#allocation10] sm:$0xff] %v2321
    // Predicated region
    $region38: #{tpu_custom_call.1} parent=1 // pred_check
      _
    $region39: #{tpu_custom_call.1} parent=1 // pred_check_branch
      %2328 = sbr.rel (0) target = $region41
    $region40: #{tpu_custom_call.1} parent=1 // pred_region
      %s2330 = ssub.s32 128, 128
      %2331 = vsyncadd [#allocation4], %s2330
      %s2333 = sshll.u32 [#allocation10], 4
      %s2334 = int_to_ptr.vmem [resolvable:$true] %s2333
      %2336 = dma.vmem_to_hbm [thread:$0]  %s2334, 128, %s5, [#allocation4]
    $region41: #{tpu_custom_call.1} parent=1 // pred_fallthru
      _
    // Predicated region
    $region42: #{tpu_custom_call.1} parent=1 // pred_check
      _
    $region43: #{tpu_custom_call.1} parent=1 // pred_check_branch
      %2338 = sbr.rel (0) target = $region45
    $region44: #{tpu_custom_call.1} parent=1 // pred_region
      %2339 = dma.done [#allocation4], 128
    $region45: #{tpu_custom_call.1} parent=1 // pred_fallthru
      _
    %2340 = vsyncpa [#allocation3], 1
    %2341 = vsyncpa [#allocation6], 1
    %2342 = vsyncpa [#allocation9], 1
    %2343 = vsyncpa [#allocation4], 1

</llo_original>
